<compile_context>
chip_gen: v7x
topology: tpu7x:2x2x1
jax: 0.10.0
libtpu: 0.0.40
codegen_flags: <defaults>
</compile_context>

<pallas_src>
import functools

import jax
import jax.numpy as jnp
from jax import lax
from jax.experimental import pallas as pl
from jax.experimental.pallas import tpu as pltpu

ALPHA = 0.5
TEMPERATURE = 0.07


def _combined_loss_kernel(
    logits_ref,    # [TB, C]  f32   (row block i; constant along j -> loaded once per i)
    lab_col_ref,   # [TB, 1]  i32   (labels of row block i)
    lab_row_ref,   # [1, TB]  i32   (labels of col block j)
    tok_i_ref,     # [TB, D]  f32   (anchor tokens, row block i)
    tok_j_ref,     # [TB, D]  f32   (contrast tokens, col block j)
    out_ref,       # [TB, 1]  f32   (per-row partial loss, written at last col block)
    m_ref,         # [TB, 1]  f32   scratch: running row max
    l_ref,         # [TB, 1]  f32   scratch: running softmax denominator
    psum_ref,      # [TB, 1]  f32   scratch: sum of sim over positives
    pcnt_ref,      # [TB, 1]  f32   scratch: number of positives
    *,
    alpha,
    inv_temp,
    matmul_dtype,
):
    i = pl.program_id(0)
    j = pl.program_id(1)
    nj = pl.num_programs(1)
    tb = out_ref.shape[0]

    # ---- init per-row accumulators at the first column block ----
    @pl.when(j == 0)
    def _init():
        m_ref[...] = jnp.full_like(m_ref, -jnp.inf)
        l_ref[...] = jnp.zeros_like(l_ref)
        psum_ref[...] = jnp.zeros_like(psum_ref)
        pcnt_ref[...] = jnp.zeros_like(pcnt_ref)

    # ---- L2-normalize token tiles (rsqrt -> EUP), O(TB*D) << O(TB^2) ----
    ti = tok_i_ref[...].astype(jnp.float32)
    tj = tok_j_ref[...].astype(jnp.float32)
    zi = ti * lax.rsqrt(jnp.sum(ti * ti, axis=-1, keepdims=True) + 1e-12)
    zj = tj * lax.rsqrt(jnp.sum(tj * tj, axis=-1, keepdims=True) + 1e-12)
    # Optional bf16 MXU inputs (recommended on v6e/v7x); f32 accumulation either way.
    zi = zi.astype(matmul_dtype)
    zj = zj.astype(matmul_dtype)

    # [TB, TB] similarity tile on the MXU (contract last axes -> no transpose needed).
    sim = lax.dot_general(
        zi, zj, (((1,), (1,)), ((), ())), preferred_element_type=jnp.float32
    ) * inv_temp

    # ---- masks: same-label (VPU compare) and non-self (one scalar-broadcast compare) ----
    same = lab_col_ref[...] == lab_row_ref[...]                     # [TB,1]==[1,TB] -> [TB,TB]
    rows = lax.broadcasted_iota(jnp.int32, (tb, tb), 0)
    cols = lax.broadcasted_iota(jnp.int32, (tb, tb), 1)
    not_self = (rows - cols) != (j - i) * tb                        # global diagonal only
    pos = jnp.logical_and(same, not_self)

    # ---- online softmax accumulation ----
    m_prev = m_ref[...]
    m_new = jnp.maximum(m_prev, jnp.max(sim, axis=-1, keepdims=True))
    scale = jnp.exp(m_prev - m_new)                                 # exp(-inf)=0 on first block
    p = jnp.where(not_self, jnp.exp(sim - m_new), 0.0)
    l_ref[...] = l_ref[...] * scale + jnp.sum(p, axis=-1, keepdims=True)
    m_ref[...] = m_new
    psum_ref[...] += jnp.sum(jnp.where(pos, sim, 0.0), axis=-1, keepdims=True)
    pcnt_ref[...] += jnp.sum(pos.astype(jnp.float32), axis=-1, keepdims=True)

    # ---- finalize at the last column block ----
    @pl.when(j == nj - 1)
    def _finalize():
        # Cross entropy on the row block (class dim resident; no onehot temporary).
        logits = logits_ref[...].astype(jnp.float32)                # [TB, C]
        row_max = jnp.max(logits, axis=-1, keepdims=True)
        lse = jnp.log(jnp.sum(jnp.exp(logits - row_max), axis=-1, keepdims=True)) + row_max
        cls = lax.broadcasted_iota(jnp.int32, logits.shape, 1)
        tgt = jnp.sum(jnp.where(cls == lab_col_ref[...], logits, 0.0), axis=-1, keepdims=True)
        ce = lse - tgt                                              # [TB, 1]

        # Supervised-contrastive term in log domain:
        #   sum_{p in P(i)} log_prob = psum - cnt * (m + log(l + eps))
        cnt = pcnt_ref[...]
        log_denom = m_ref[...] + jnp.log(l_ref[...] + 1e-12)
        inv_cnt = pl.reciprocal(jnp.maximum(cnt, 1.0), approx=True)  # EUP; rows w/o positives -> 0
        con = -(psum_ref[...] - cnt * log_denom) * inv_cnt          # [TB, 1]

        out_ref[...] = alpha * ce + (1.0 - alpha) * con


def _pick_block(batch):
    # Column-label block (1, TB) must have TB % 128 == 0 or TB == B (lane rule).
    for t in (256, 128):
        if batch % t == 0:
            return t
    return batch  # TODO(synk): pad ragged batches instead of falling back to a single block.


def combined_loss(
    outputs,            # [B, C] float logits
    targets,            # [B]    int labels
    part_tokens,        # [B, D] float embeddings
    *,
    alpha=ALPHA,
    temperature=TEMPERATURE,
    block_b=None,
    matmul_dtype=jnp.float32,   # set to jnp.bfloat16 on v6e/v7x for ~2x MXU throughput
):
    B, C = outputs.shape
    D = part_tokens.shape[-1]
    tb = _pick_block(B) if block_b is None else block_b
    assert B % tb == 0, (B, tb)
    g = B // tb

    outputs = outputs.astype(jnp.float32)
    tokens = part_tokens.astype(jnp.float32)
    labels_col = targets.reshape(B, 1).astype(jnp.int32)
    labels_row = targets.reshape(1, B).astype(jnp.int32)

    kernel = functools.partial(
        _combined_loss_kernel,
        alpha=float(alpha),
        inv_temp=float(1.0 / temperature),
        matmul_dtype=matmul_dtype,
    )

    per_row = pl.pallas_call(
        kernel,
        out_shape=jax.ShapeDtypeStruct((B, 1), jnp.float32),
        grid_spec=pltpu.PrefetchScalarGridSpec(
            num_scalar_prefetch=0,
            grid=(g, g),
            in_specs=[
                pl.BlockSpec((tb, C), lambda i, j: (i, 0)),   # logits (row block)
                pl.BlockSpec((tb, 1), lambda i, j: (i, 0)),   # labels as column
                pl.BlockSpec((1, tb), lambda i, j: (0, j)),   # labels as row
                pl.BlockSpec((tb, D), lambda i, j: (i, 0)),   # anchor tokens
                pl.BlockSpec((tb, D), lambda i, j: (j, 0)),   # contrast tokens
            ],
            out_specs=pl.BlockSpec((tb, 1), lambda i, j: (i, 0)),
            scratch_shapes=[pltpu.VMEM((tb, 1), jnp.float32)] * 4,
        ),
        compiler_params=pltpu.CompilerParams(
            dimension_semantics=("parallel", "arbitrary"),
        ),
    )(outputs, labels_col, labels_row, tokens, tokens)

    # Tiny final reduction in the wrapper keeps the row axis truly parallel across cores.
    return jnp.sum(per_row) / B


def _reference_combined_loss(outputs, targets, part_tokens, alpha=ALPHA, temperature=TEMPERATURE):
    # pure-JAX reference for sanity checking
    lse = jax.nn.logsumexp(outputs, axis=-1)
    ce = jnp.mean(lse - jnp.take_along_axis(outputs, targets[:, None], axis=-1)[:, 0])

    z = part_tokens / jnp.sqrt(jnp.sum(part_tokens**2, axis=-1, keepdims=True) + 1e-12)
    sim = (z @ z.T) / temperature
    B = sim.shape[0]
    nonself = 1.0 - jnp.eye(B)
    same = (targets[:, None] == targets[None, :]).astype(jnp.float32)
    pos = same * nonself
    sim_s = sim - jnp.max(sim, axis=-1, keepdims=True)
    denom = jnp.sum(jnp.exp(sim_s) * nonself, axis=-1, keepdims=True)
    log_prob = sim_s - jnp.log(denom + 1e-12)
    cnt = jnp.sum(pos, axis=-1)
    mlp = jnp.sum(pos * log_prob, axis=-1) / jnp.maximum(cnt, 1.0)
    con = jnp.mean(-mlp)
    return alpha * ce + (1 - alpha) * con


if __name__ == "__main__":
    key = jax.random.PRNGKey(0)
    k1, k2, k3 = jax.random.split(key, 3)

    # Small absolute sizes, but B=256 with block_b=128 exercises the real 2x2 tiled path
    # (online softmax across column blocks, diagonal masking only on i==j tiles, megacore-safe
    # parallel row axis).
    B, C, D = 256, 16, 32
    outputs = jax.random.normal(k1, (B, C), dtype=jnp.float32)
    targets = jax.random.randint(k2, (B,), 0, 4, dtype=jnp.int32)   # 4 classes -> positives exist
    part_tokens = jax.random.normal(k3, (B, D), dtype=jnp.float32)

    loss = combined_loss(outputs, targets, part_tokens, block_b=128)
    loss = jax.block_until_ready(loss)

    ref = _reference_combined_loss(outputs, targets, part_tokens)
    # Tolerance accounts for pl.reciprocal(approx=True) on the EUP and fp32 reassociation in the
    # tiled online softmax.
    assert bool(jnp.isfinite(loss)), loss
    assert jnp.allclose(loss, ref, atol=1e-2, rtol=1e-2), (loss, ref)

    print("KERNEL_OK")
</pallas_src>

<mosaic_0001>
module attributes {stable_mosaic.version = 11 : i64} {
  func.func @_combined_loss_kernel(%arg0: i32, %arg1: i32, %arg2: memref<128x16xf32, #tpu.memory_space<vmem>>, %arg3: memref<128x1xi32, #tpu.memory_space<vmem>>, %arg4: memref<1x128xi32, #tpu.memory_space<vmem>>, %arg5: memref<128x32xf32, #tpu.memory_space<vmem>>, %arg6: memref<128x32xf32, #tpu.memory_space<vmem>>, %arg7: memref<128x1xf32, #tpu.memory_space<vmem>>, %arg8: memref<128x1xf32, #tpu.memory_space<vmem>>, %arg9: memref<128x1xf32, #tpu.memory_space<vmem>>, %arg10: memref<128x1xf32, #tpu.memory_space<vmem>>, %arg11: memref<128x1xf32, #tpu.memory_space<vmem>>) attributes {dimension_semantics = [#tpu.dimension_semantics<parallel>, #tpu.dimension_semantics<arbitrary>], iteration_bounds = array<i64: 2, 2>, scalar_prefetch = 0 : i64, scratch_operands = 4 : i64, tpu.core_type = #tpu.core_type<tc>, window_params = [{transform_indices = @transform_0, window_bounds = array<i64: 128, 16>}, {transform_indices = @transform_1, window_bounds = array<i64: 128, 1>}, {transform_indices = @transform_2, window_bounds = array<i64: 1, 128>}, {transform_indices = @transform_3, window_bounds = array<i64: 128, 32>}, {transform_indices = @transform_4, window_bounds = array<i64: 128, 32>}, {transform_indices = @transform_5, window_bounds = array<i64: 128, 1>}]} {
    %c0_i32 = arith.constant 0 : i32
    %0 = arith.cmpi eq, %arg1, %c0_i32 : i32
    %1 = arith.extui %0 : i1 to i32
    %c0_i32_0 = arith.constant 0 : i32
    %2 = arith.cmpi ne, %1, %c0_i32_0 : i32
    scf.if %2 {
      %cst_36 = arith.constant 0xFF800000 : f32
      %72 = vector.broadcast %cst_36 : f32 to vector<128x1xf32>
      %c0_37 = arith.constant 0 : index
      %c0_38 = arith.constant 0 : index
      %73 = vector.load %arg8[%c0_37, %c0_38] : memref<128x1xf32, #tpu.memory_space<vmem>>, vector<128x1xf32>
      tpu.vector_store %arg8[%c0_37, %c0_38], %72 {strides = array<i32>} : memref<128x1xf32, #tpu.memory_space<vmem>>, vector<128x1xf32>,
      %cst_39 = arith.constant 0.000000e+00 : f32
      %74 = vector.broadcast %cst_39 : f32 to vector<128x1xf32>
      %c0_40 = arith.constant 0 : index
      %c0_41 = arith.constant 0 : index
      %75 = vector.load %arg9[%c0_40, %c0_41] : memref<128x1xf32, #tpu.memory_space<vmem>>, vector<128x1xf32>
      tpu.vector_store %arg9[%c0_40, %c0_41], %74 {strides = array<i32>} : memref<128x1xf32, #tpu.memory_space<vmem>>, vector<128x1xf32>,
      %cst_42 = arith.constant 0.000000e+00 : f32
      %76 = vector.broadcast %cst_42 : f32 to vector<128x1xf32>
      %c0_43 = arith.constant 0 : index
      %c0_44 = arith.constant 0 : index
      %77 = vector.load %arg10[%c0_43, %c0_44] : memref<128x1xf32, #tpu.memory_space<vmem>>, vector<128x1xf32>
      tpu.vector_store %arg10[%c0_43, %c0_44], %76 {strides = array<i32>} : memref<128x1xf32, #tpu.memory_space<vmem>>, vector<128x1xf32>,
      %cst_45 = arith.constant 0.000000e+00 : f32
      %78 = vector.broadcast %cst_45 : f32 to vector<128x1xf32>
      %c0_46 = arith.constant 0 : index
      %c0_47 = arith.constant 0 : index
      %79 = vector.load %arg11[%c0_46, %c0_47] : memref<128x1xf32, #tpu.memory_space<vmem>>, vector<128x1xf32>
      tpu.vector_store %arg11[%c0_46, %c0_47], %78 {strides = array<i32>} : memref<128x1xf32, #tpu.memory_space<vmem>>, vector<128x1xf32>,
    } else {
    }
    %c0 = arith.constant 0 : index
    %c0_1 = arith.constant 0 : index
    %3 = vector.load %arg5[%c0, %c0_1] : memref<128x32xf32, #tpu.memory_space<vmem>>, vector<128x32xf32>
    %c0_2 = arith.constant 0 : index
    %c0_3 = arith.constant 0 : index
    %4 = vector.load %arg6[%c0_2, %c0_3] : memref<128x32xf32, #tpu.memory_space<vmem>>, vector<128x32xf32>
    %5 = arith.mulf %3, %3 : vector<128x32xf32>
    %cst = arith.constant dense<0.000000e+00> : vector<128xf32>
    %6 = vector.multi_reduction <add>, %5, %cst [1] : vector<128x32xf32> to vector<128xf32>
    %7 = vector.shape_cast %6 : vector<128xf32> to vector<128x1xf32>
    %cst_4 = arith.constant 9.99999996E-13 : f32
    %8 = vector.broadcast %cst_4 : f32 to vector<128x1xf32>
    %9 = arith.addf %7, %8 : vector<128x1xf32>
    %10 = math.rsqrt %9 : vector<128x1xf32>
    %11 = vector.broadcast %10 : vector<128x1xf32> to vector<128x32xf32>
    %12 = arith.mulf %3, %11 : vector<128x32xf32>
    %13 = arith.mulf %4, %4 : vector<128x32xf32>
    %cst_5 = arith.constant dense<0.000000e+00> : vector<128xf32>
    %14 = vector.multi_reduction <add>, %13, %cst_5 [1] : vector<128x32xf32> to vector<128xf32>
    %15 = vector.shape_cast %14 : vector<128xf32> to vector<128x1xf32>
    %cst_6 = arith.constant 9.99999996E-13 : f32
    %16 = vector.broadcast %cst_6 : f32 to vector<128x1xf32>
    %17 = arith.addf %15, %16 : vector<128x1xf32>
    %18 = math.rsqrt %17 : vector<128x1xf32>
    %19 = vector.broadcast %18 : vector<128x1xf32> to vector<128x32xf32>
    %20 = arith.mulf %4, %19 : vector<128x32xf32>
    %cst_7 = arith.constant dense<0.000000e+00> : vector<128x128xf32>
    %21 = tpu.matmul %12, %20, %cst_7 {dimension_numbers = #tpu.dot_dimension_numbers<[1], [1], [0], [0], [0, 0, 1, 0], [], []>} : vector<128x32xf32>, vector<128x32xf32>, vector<128x128xf32> -> vector<128x128xf32>
    %cst_8 = arith.constant 14.2857141 : f32
    %22 = vector.broadcast %cst_8 : f32 to vector<128x128xf32>
    %23 = arith.mulf %21, %22 : vector<128x128xf32>
    %c0_9 = arith.constant 0 : index
    %c0_10 = arith.constant 0 : index
    %24 = vector.load %arg3[%c0_9, %c0_10] : memref<128x1xi32, #tpu.memory_space<vmem>>, vector<128x1xi32>
    %c0_11 = arith.constant 0 : index
    %c0_12 = arith.constant 0 : index
    %25 = vector.load %arg4[%c0_11, %c0_12] : memref<1x128xi32, #tpu.memory_space<vmem>>, vector<1x128xi32>
    %26 = vector.broadcast %24 : vector<128x1xi32> to vector<128x128xi32>
    %27 = vector.broadcast %25 : vector<1x128xi32> to vector<128x128xi32>
    %28 = arith.cmpi eq, %26, %27 : vector<128x128xi32>
    %29 = tpu.iota {dimensions = array<i32: 0>} : vector<128x128xi32>
    %30 = tpu.iota {dimensions = array<i32: 1>} : vector<128x128xi32>
    %31 = arith.subi %29, %30 : vector<128x128xi32>
    %32 = arith.subi %arg1, %arg0 : i32
    %c128_i32 = arith.constant 128 : i32
    %33 = arith.muli %32, %c128_i32 : i32
    %34 = vector.broadcast %33 : i32 to vector<128x128xi32>
    %35 = arith.cmpi ne, %31, %34 : vector<128x128xi32>
    %36 = arith.andi %28, %35 : vector<128x128xi1>
    %c0_13 = arith.constant 0 : index
    %c0_14 = arith.constant 0 : index
    %37 = vector.load %arg8[%c0_13, %c0_14] : memref<128x1xf32, #tpu.memory_space<vmem>>, vector<128x1xf32>
    %cst_15 = arith.constant dense<0xFF800000> : vector<128xf32>
    %38 = vector.multi_reduction <maximumf>, %23, %cst_15 [1] : vector<128x128xf32> to vector<128xf32>
    %39 = vector.shape_cast %38 : vector<128xf32> to vector<128x1xf32>
    %40 = arith.maximumf %37, %39 : vector<128x1xf32>
    %41 = arith.subf %37, %40 : vector<128x1xf32>
    %42 = math.exp %41 : vector<128x1xf32>
    %43 = vector.broadcast %40 : vector<128x1xf32> to vector<128x128xf32>
    %44 = arith.subf %23, %43 : vector<128x128xf32>
    %45 = math.exp %44 : vector<128x128xf32>
    %cst_16 = arith.constant 0.000000e+00 : f32
    %46 = vector.broadcast %cst_16 : f32 to vector<128x128xf32>
    %47 = arith.select %35, %45, %46 : vector<128x128xi1>, vector<128x128xf32>
    %c0_17 = arith.constant 0 : index
    %c0_18 = arith.constant 0 : index
    %48 = vector.load %arg9[%c0_17, %c0_18] : memref<128x1xf32, #tpu.memory_space<vmem>>, vector<128x1xf32>
    %49 = arith.mulf %48, %42 : vector<128x1xf32>
    %cst_19 = arith.constant dense<0.000000e+00> : vector<128xf32>
    %50 = vector.multi_reduction <add>, %47, %cst_19 [1] : vector<128x128xf32> to vector<128xf32>
    %51 = vector.shape_cast %50 : vector<128xf32> to vector<128x1xf32>
    %52 = arith.addf %49, %51 : vector<128x1xf32>
    %c0_20 = arith.constant 0 : index
    %c0_21 = arith.constant 0 : index
    %53 = vector.load %arg9[%c0_20, %c0_21] : memref<128x1xf32, #tpu.memory_space<vmem>>, vector<128x1xf32>
    tpu.vector_store %arg9[%c0_20, %c0_21], %52 {strides = array<i32>} : memref<128x1xf32, #tpu.memory_space<vmem>>, vector<128x1xf32>,
    %c0_22 = arith.constant 0 : index
    %c0_23 = arith.constant 0 : index
    %54 = vector.load %arg8[%c0_22, %c0_23] : memref<128x1xf32, #tpu.memory_space<vmem>>, vector<128x1xf32>
    tpu.vector_store %arg8[%c0_22, %c0_23], %40 {strides = array<i32>} : memref<128x1xf32, #tpu.memory_space<vmem>>, vector<128x1xf32>,
    %c0_24 = arith.constant 0 : index
    %c0_25 = arith.constant 0 : index
    %55 = vector.load %arg10[%c0_24, %c0_25] : memref<128x1xf32, #tpu.memory_space<vmem>>, vector<128x1xf32>
    %cst_26 = arith.constant 0.000000e+00 : f32
    %56 = vector.broadcast %cst_26 : f32 to vector<128x128xf32>
    %57 = arith.select %36, %23, %56 : vector<128x128xi1>, vector<128x128xf32>
    %cst_27 = arith.constant dense<0.000000e+00> : vector<128xf32>
    %58 = vector.multi_reduction <add>, %57, %cst_27 [1] : vector<128x128xf32> to vector<128xf32>
    %59 = vector.shape_cast %58 : vector<128xf32> to vector<128x1xf32>
    %60 = arith.addf %55, %59 : vector<128x1xf32>
    %c0_28 = arith.constant 0 : index
    %c0_29 = arith.constant 0 : index
    %61 = vector.load %arg10[%c0_28, %c0_29] : memref<128x1xf32, #tpu.memory_space<vmem>>, vector<128x1xf32>
    tpu.vector_store %arg10[%c0_28, %c0_29], %60 {strides = array<i32>} : memref<128x1xf32, #tpu.memory_space<vmem>>, vector<128x1xf32>,
    %c0_30 = arith.constant 0 : index
    %c0_31 = arith.constant 0 : index
    %62 = vector.load %arg11[%c0_30, %c0_31] : memref<128x1xf32, #tpu.memory_space<vmem>>, vector<128x1xf32>
    %63 = arith.extui %36 : vector<128x128xi1> to vector<128x128xi32>
    %64 = arith.sitofp %63 : vector<128x128xi32> to vector<128x128xf32>
    %cst_32 = arith.constant dense<0.000000e+00> : vector<128xf32>
    %65 = vector.multi_reduction <add>, %64, %cst_32 [1] : vector<128x128xf32> to vector<128xf32>
    %66 = vector.shape_cast %65 : vector<128xf32> to vector<128x1xf32>
    %67 = arith.addf %62, %66 : vector<128x1xf32>
    %c0_33 = arith.constant 0 : index
    %c0_34 = arith.constant 0 : index
    %68 = vector.load %arg11[%c0_33, %c0_34] : memref<128x1xf32, #tpu.memory_space<vmem>>, vector<128x1xf32>
    tpu.vector_store %arg11[%c0_33, %c0_34], %67 {strides = array<i32>} : memref<128x1xf32, #tpu.memory_space<vmem>>, vector<128x1xf32>,
    %c1_i32 = arith.constant 1 : i32
    %69 = arith.cmpi eq, %arg1, %c1_i32 : i32
    %70 = arith.extui %69 : i1 to i32
    %c0_i32_35 = arith.constant 0 : i32
    %71 = arith.cmpi ne, %70, %c0_i32_35 : i32
    scf.if %71 {
      %c0_36 = arith.constant 0 : index
      %c0_37 = arith.constant 0 : index
      %72 = vector.load %arg2[%c0_36, %c0_37] : memref<128x16xf32, #tpu.memory_space<vmem>>, vector<128x16xf32>
      %cst_38 = arith.constant dense<0xFF800000> : vector<128xf32>
      %73 = vector.multi_reduction <maximumf>, %72, %cst_38 [1] : vector<128x16xf32> to vector<128xf32>
      %74 = vector.shape_cast %73 : vector<128xf32> to vector<128x1xf32>
      %75 = vector.broadcast %74 : vector<128x1xf32> to vector<128x16xf32>
      %76 = arith.subf %72, %75 : vector<128x16xf32>
      %77 = math.exp %76 : vector<128x16xf32>
      %cst_39 = arith.constant dense<0.000000e+00> : vector<128xf32>
      %78 = vector.multi_reduction <add>, %77, %cst_39 [1] : vector<128x16xf32> to vector<128xf32>
      %79 = vector.shape_cast %78 : vector<128xf32> to vector<128x1xf32>
      %80 = math.log %79 : vector<128x1xf32>
      %81 = arith.addf %80, %74 : vector<128x1xf32>
      %82 = tpu.iota {dimensions = array<i32: 1>} : vector<128x16xi32>
      %c0_40 = arith.constant 0 : index
      %c0_41 = arith.constant 0 : index
      %83 = vector.load %arg3[%c0_40, %c0_41] : memref<128x1xi32, #tpu.memory_space<vmem>>, vector<128x1xi32>
      %84 = vector.broadcast %83 : vector<128x1xi32> to vector<128x16xi32>
      %85 = arith.cmpi eq, %82, %84 : vector<128x16xi32>
      %cst_42 = arith.constant 0.000000e+00 : f32
      %86 = vector.broadcast %cst_42 : f32 to vector<128x16xf32>
      %87 = arith.select %85, %72, %86 : vector<128x16xi1>, vector<128x16xf32>
      %cst_43 = arith.constant dense<0.000000e+00> : vector<128xf32>
      %88 = vector.multi_reduction <add>, %87, %cst_43 [1] : vector<128x16xf32> to vector<128xf32>
      %89 = vector.shape_cast %88 : vector<128xf32> to vector<128x1xf32>
      %90 = arith.subf %81, %89 : vector<128x1xf32>
      %c0_44 = arith.constant 0 : index
      %c0_45 = arith.constant 0 : index
      %91 = vector.load %arg11[%c0_44, %c0_45] : memref<128x1xf32, #tpu.memory_space<vmem>>, vector<128x1xf32>
      %c0_46 = arith.constant 0 : index
      %c0_47 = arith.constant 0 : index
      %92 = vector.load %arg8[%c0_46, %c0_47] : memref<128x1xf32, #tpu.memory_space<vmem>>, vector<128x1xf32>
      %c0_48 = arith.constant 0 : index
      %c0_49 = arith.constant 0 : index
      %93 = vector.load %arg9[%c0_48, %c0_49] : memref<128x1xf32, #tpu.memory_space<vmem>>, vector<128x1xf32>
      %cst_50 = arith.constant 9.99999996E-13 : f32
      %94 = vector.broadcast %cst_50 : f32 to vector<128x1xf32>
      %95 = arith.addf %93, %94 : vector<128x1xf32>
      %96 = math.log %95 : vector<128x1xf32>
      %97 = arith.addf %92, %96 : vector<128x1xf32>
      %cst_51 = arith.constant 1.000000e+00 : f32
      %98 = vector.broadcast %cst_51 : f32 to vector<128x1xf32>
      %99 = arith.maximumf %91, %98 : vector<128x1xf32>
      %100 = tpu.reciprocal %99 {approx = true} : vector<128x1xf32> -> vector<128x1xf32>
      %c0_52 = arith.constant 0 : index
      %c0_53 = arith.constant 0 : index
      %101 = vector.load %arg10[%c0_52, %c0_53] : memref<128x1xf32, #tpu.memory_space<vmem>>, vector<128x1xf32>
      %102 = arith.mulf %91, %97 : vector<128x1xf32>
      %103 = arith.subf %101, %102 : vector<128x1xf32>
      %cst_54 = arith.constant 0.000000e+00 : f32
      %104 = vector.broadcast %cst_54 : f32 to vector<128x1xf32>
      %105 = arith.subf %104, %103 : vector<128x1xf32>
      %106 = arith.mulf %105, %100 : vector<128x1xf32>
      %cst_55 = arith.constant 5.000000e-01 : f32
      %107 = vector.broadcast %cst_55 : f32 to vector<128x1xf32>
      %108 = arith.mulf %107, %90 : vector<128x1xf32>
      %cst_56 = arith.constant 5.000000e-01 : f32
      %109 = vector.broadcast %cst_56 : f32 to vector<128x1xf32>
      %110 = arith.mulf %109, %106 : vector<128x1xf32>
      %111 = arith.addf %108, %110 : vector<128x1xf32>
      %c0_57 = arith.constant 0 : index
      %c0_58 = arith.constant 0 : index
      %112 = vector.load %arg7[%c0_57, %c0_58] : memref<128x1xf32, #tpu.memory_space<vmem>>, vector<128x1xf32>
      tpu.vector_store %arg7[%c0_57, %c0_58], %111 {strides = array<i32>} : memref<128x1xf32, #tpu.memory_space<vmem>>, vector<128x1xf32>,
    } else {
    }
    return
  }
  func.func @transform_0(%arg0: i32, %arg1: i32) -> (i32, i32) {
    %c0_i32 = arith.constant 0 : i32
    %c0_i32_0 = arith.constant 0 : i32
    return %arg0, %c0_i32 : i32, i32
  }
  func.func @transform_1(%arg0: i32, %arg1: i32) -> (i32, i32) {
    %c0_i32 = arith.constant 0 : i32
    %c0_i32_0 = arith.constant 0 : i32
    return %arg0, %c0_i32 : i32, i32
  }
  func.func @transform_2(%arg0: i32, %arg1: i32) -> (i32, i32) {
    %c0_i32 = arith.constant 0 : i32
    %c0_i32_0 = arith.constant 0 : i32
    return %c0_i32, %arg1 : i32, i32
  }
  func.func @transform_3(%arg0: i32, %arg1: i32) -> (i32, i32) {
    %c0_i32 = arith.constant 0 : i32
    %c0_i32_0 = arith.constant 0 : i32
    return %arg0, %c0_i32 : i32, i32
  }
  func.func @transform_4(%arg0: i32, %arg1: i32) -> (i32, i32) {
    %c0_i32 = arith.constant 0 : i32
    %c0_i32_0 = arith.constant 0 : i32
    return %arg1, %c0_i32 : i32, i32
  }
  func.func @transform_5(%arg0: i32, %arg1: i32) -> (i32, i32) {
    %c0_i32 = arith.constant 0 : i32
    %c0_i32_0 = arith.constant 0 : i32
    return %arg0, %c0_i32 : i32, i32
  }
}

</mosaic_0001>

<llo_original>
// kernel: tpu_custom_call.1
$region0: #{tpu_custom_call.1}
  #allocation0 [shape = 'u32[]', space=smem, size = 0x4, offset = 0x4, fixed_abs, tag = 'smem constant byte address 0x4 - core index']
  #allocation1 [shape = 'u32[144,128]{1,0:T(1,128)}', space=vmem, size = 0x12000, scoped, tag = 'internal scratch']
  #allocation2 [shape = 'f32[128,1]{1,0:T(8,128)}', space=vmem, size = 0x10000, scoped, tag = 'scratch operand']
  #allocation3 [shape = 'f32[128,1]{1,0:T(8,128)}', space=vmem, size = 0x10000, scoped, tag = 'scratch operand']
  #allocation4 [shape = 'f32[128,1]{1,0:T(8,128)}', space=vmem, size = 0x10000, scoped, tag = 'scratch operand']
  #allocation5 [shape = 'f32[128,1]{1,0:T(8,128)}', space=vmem, size = 0x10000, scoped, tag = 'scratch operand']
  %s0 = inlined_call_operand.vmem [shape: f32[256,16], index: 0, kind: input, shape index: {}]
  %s1 = inlined_call_operand.vmem [shape: s32[256,1], index: 1, kind: input, shape index: {}]
  %s2 = inlined_call_operand.vmem [shape: s32[1,256], index: 2, kind: input, shape index: {}]
  %s3 = inlined_call_operand.vmem [shape: f32[256,32], index: 3, kind: input, shape index: {}]
  %s4 = inlined_call_operand.vmem [shape: f32[256,32], index: 4, kind: input, shape index: {}]
  %s5 = inlined_call_operand.vmem [shape: f32[256,1], index: 5, kind: output, shape index: {}]
  %s6 = sld [smem:[#allocation0]]
  $region61: #{tpu_custom_call.1} parent=0
    _
  %s8 = ssub.s32 1, %s6
  %s9 = scalar_select 0, %s8, %s6
  loop: start=0, step=1, limit=6
  $region2: #{tpu_custom_call.1} parent=0 // loop_pre_header
    _
  $region3: #{tpu_custom_call.1} parent=0 // loop_header
    %s11 = sphi 0, %s15
    %p12 = scmp.ge.s32.totalorder %s11, 6
    %s18 = sphi 0, %s30
    %s19 = sphi 0, %s26
    %s20 = sphi 0, %s18
    %s21 = sphi 0, %s19
    %s22 = sphi 0, %s20
    %s23 = sphi 0, %s21
    %s33 = sphi 0, %s35
    %s36 = sphi 0, %s33
    %s37 = sphi 0, %s36
    %s53 = sphi 0, %s37
    %s59 = sphi 0, %s61
    %s62 = sphi 0, %s59
    %s63 = sphi 0, %s62
    %s79 = sphi 0, %s63
    %s85 = sphi 0, %s87
    %s88 = sphi 0, %s85
    %s89 = sphi 0, %s88
    %s105 = sphi 0, %s89
    %s111 = sphi 0, %s113
    %s114 = sphi 0, %s111
    %s115 = sphi 0, %s114
    %s131 = sphi 0, %s115
    %s137 = sphi 0, %s139
    %s140 = sphi 0, %s137
    %s141 = sphi 0, %s140
    %s157 = sphi 0, %s141
    %s163 = sphi 0, %s165
    %s166 = sphi 0, %s163
    %s167 = sphi 0, %s166
    %s183 = sphi 0, %s167
  $region4: #{tpu_custom_call.1} parent=0 // loop_header_branch
    %14 = sbr.rel (%p12) target = $region8
  $region5: #{tpu_custom_call.1} parent=0 // loop_body
    %s16 = ssub.s32 %s11, 1
    %s17 = ssub.s32 %s11, 2
    %s24 = sadd.s32 1, %s19
    %p25 = scmp.ge.s32.totalorder %s24, 2
    %s26 = scalar_select %p25, 0, %s24
    %s27 = sadd.s32 1, %s18
    %s28 = scalar_select %p25, %s27, %s18
    %p29 = scmp.ge.s32.totalorder %s28, 2
    %s30 = scalar_select %p29, 0, %s28
    %s31 = ssub.s32 %s18, %s30
    %p32 = scmp.eq.s32.totalorder %s31, 0
    %s34 = sadd.s32 %s33, 1
    %s35 = scalar_select %p32, %s33, %s34
    %p38 = pneg %p32
    %p39 = scmp.eq.s32.totalorder %s11, 3
    %p40 = por %p38, %p39
    %p41 = scmp.ne.s32.totalorder %s33, %s36
    %p42 = scmp.eq.s32.totalorder %s11, 0
    %p43 = por %p41, %p42
    %p44 = scmp.ne.s32.totalorder %s33, %s36
    %p45 = scmp.eq.s32.totalorder %s16, 3
    %p46 = por %p44, %p45
    %p47 = scmp.ne.s32.totalorder %s36, %s37
    %p48 = scmp.eq.s32.totalorder %s16, 0
    %p49 = por %p47, %p48
    %p50 = scmp.ne.s32.totalorder %s36, %s37
    %p51 = scmp.eq.s32.totalorder %s17, 3
    %p52 = por %p50, %p51
    %p54 = scmp.ne.s32.totalorder %s37, %s53
    %p55 = scmp.eq.s32.totalorder %s17, 0
    %p56 = por %p54, %p55
    %s57 = ssub.s32 %s18, %s30
    %p58 = scmp.eq.s32.totalorder %s57, 0
    %s60 = sadd.s32 %s59, 1
    %s61 = scalar_select %p58, %s59, %s60
    %p64 = pneg %p58
    %p65 = scmp.eq.s32.totalorder %s11, 3
    %p66 = por %p64, %p65
    %p67 = scmp.ne.s32.totalorder %s59, %s62
    %p68 = scmp.eq.s32.totalorder %s11, 0
    %p69 = por %p67, %p68
    %p70 = scmp.ne.s32.totalorder %s59, %s62
    %p71 = scmp.eq.s32.totalorder %s16, 3
    %p72 = por %p70, %p71
    %p73 = scmp.ne.s32.totalorder %s62, %s63
    %p74 = scmp.eq.s32.totalorder %s16, 0
    %p75 = por %p73, %p74
    %p76 = scmp.ne.s32.totalorder %s62, %s63
    %p77 = scmp.eq.s32.totalorder %s17, 3
    %p78 = por %p76, %p77
    %p80 = scmp.ne.s32.totalorder %s63, %s79
    %p81 = scmp.eq.s32.totalorder %s17, 0
    %p82 = por %p80, %p81
    %s83 = ssub.s32 %s19, %s26
    %p84 = scmp.eq.s32.totalorder %s83, 0
    %s86 = sadd.s32 %s85, 1
    %s87 = scalar_select %p84, %s85, %s86
    %p90 = pneg %p84
    %p91 = scmp.eq.s32.totalorder %s11, 3
    %p92 = por %p90, %p91
    %p93 = scmp.ne.s32.totalorder %s85, %s88
    %p94 = scmp.eq.s32.totalorder %s11, 0
    %p95 = por %p93, %p94
    %p96 = scmp.ne.s32.totalorder %s85, %s88
    %p97 = scmp.eq.s32.totalorder %s16, 3
    %p98 = por %p96, %p97
    %p99 = scmp.ne.s32.totalorder %s88, %s89
    %p100 = scmp.eq.s32.totalorder %s16, 0
    %p101 = por %p99, %p100
    %p102 = scmp.ne.s32.totalorder %s88, %s89
    %p103 = scmp.eq.s32.totalorder %s17, 3
    %p104 = por %p102, %p103
    %p106 = scmp.ne.s32.totalorder %s89, %s105
    %p107 = scmp.eq.s32.totalorder %s17, 0
    %p108 = por %p106, %p107
    %s109 = ssub.s32 %s18, %s30
    %p110 = scmp.eq.s32.totalorder %s109, 0
    %s112 = sadd.s32 %s111, 1
    %s113 = scalar_select %p110, %s111, %s112
    %p116 = pneg %p110
    %p117 = scmp.eq.s32.totalorder %s11, 3
    %p118 = por %p116, %p117
    %p119 = scmp.ne.s32.totalorder %s111, %s114
    %p120 = scmp.eq.s32.totalorder %s11, 0
    %p121 = por %p119, %p120
    %p122 = scmp.ne.s32.totalorder %s111, %s114
    %p123 = scmp.eq.s32.totalorder %s16, 3
    %p124 = por %p122, %p123
    %p125 = scmp.ne.s32.totalorder %s114, %s115
    %p126 = scmp.eq.s32.totalorder %s16, 0
    %p127 = por %p125, %p126
    %p128 = scmp.ne.s32.totalorder %s114, %s115
    %p129 = scmp.eq.s32.totalorder %s17, 3
    %p130 = por %p128, %p129
    %p132 = scmp.ne.s32.totalorder %s115, %s131
    %p133 = scmp.eq.s32.totalorder %s17, 0
    %p134 = por %p132, %p133
    %s135 = ssub.s32 %s19, %s26
    %p136 = scmp.eq.s32.totalorder %s135, 0
    %s138 = sadd.s32 %s137, 1
    %s139 = scalar_select %p136, %s137, %s138
    %p142 = pneg %p136
    %p143 = scmp.eq.s32.totalorder %s11, 3
    %p144 = por %p142, %p143
    %p145 = scmp.ne.s32.totalorder %s137, %s140
    %p146 = scmp.eq.s32.totalorder %s11, 0
    %p147 = por %p145, %p146
    %p148 = scmp.ne.s32.totalorder %s137, %s140
    %p149 = scmp.eq.s32.totalorder %s16, 3
    %p150 = por %p148, %p149
    %p151 = scmp.ne.s32.totalorder %s140, %s141
    %p152 = scmp.eq.s32.totalorder %s16, 0
    %p153 = por %p151, %p152
    %p154 = scmp.ne.s32.totalorder %s140, %s141
    %p155 = scmp.eq.s32.totalorder %s17, 3
    %p156 = por %p154, %p155
    %p158 = scmp.ne.s32.totalorder %s141, %s157
    %p159 = scmp.eq.s32.totalorder %s17, 0
    %p160 = por %p158, %p159
    %s161 = ssub.s32 %s18, %s30
    %p162 = scmp.eq.s32.totalorder %s161, 0
    %s164 = sadd.s32 %s163, 1
    %s165 = scalar_select %p162, %s163, %s164
    %p168 = pneg %p162
    %p169 = scmp.eq.s32.totalorder %s11, 3
    %p170 = por %p168, %p169
    %p171 = scmp.ne.s32.totalorder %s163, %s166
    %p172 = scmp.eq.s32.totalorder %s11, 0
    %p173 = por %p171, %p172
    %p174 = scmp.ne.s32.totalorder %s163, %s166
    %p175 = scmp.eq.s32.totalorder %s16, 3
    %p176 = por %p174, %p175
    %p177 = scmp.ne.s32.totalorder %s166, %s167
    %p178 = scmp.eq.s32.totalorder %s16, 0
    %p179 = por %p177, %p178
    %p180 = scmp.ne.s32.totalorder %s166, %s167
    %p181 = scmp.eq.s32.totalorder %s17, 3
    %p182 = por %p180, %p181
    %p184 = scmp.ne.s32.totalorder %s167, %s183
    %p185 = scmp.eq.s32.totalorder %s17, 0
    %p186 = por %p184, %p185
    %p187 = scmp.le.s32.totalorder 1, %s11
    %p188 = scmp.lt.s32.totalorder %s11, 5
    %p189 = pnand %p187, %p188
    %p190 = pneg %p189
    // Predicated region
    $region9: #{tpu_custom_call.1} parent=5 // pred_check
      _
    $region10: #{tpu_custom_call.1} parent=5 // pred_check_branch
      %192 = sbr.rel (%p189) target = $region12
    $region11: #{tpu_custom_call.1} parent=5 // pred_region
      %s193 = ssub.s32 %s11, 1
    $region12: #{tpu_custom_call.1} parent=5 // pred_fallthru
      _
    %p194 = scmp.lt.s32.totalorder %s11, 4
    // Predicated region
    $region13: #{tpu_custom_call.1} parent=5 // pred_check
      %p195 = pneg %p194
    $region14: #{tpu_custom_call.1} parent=5 // pred_check_branch
      %197 = sbr.rel (%p195) target = $region16
    $region15: #{tpu_custom_call.1} parent=5 // pred_region
      // Predicated region
      $region17: #{tpu_custom_call.1} parent=15 // pred_check
        %p198 = pneg %p43
      $region18: #{tpu_custom_call.1} parent=15 // pred_check_branch
        %200 = sbr.rel (%p198) target = $region20
      $region19: #{tpu_custom_call.1} parent=15 // pred_region
        %s201 = smul.u32 16, %s18
        %p202 = scmp.lt.s32.totalorder %s201, 31
        %s203 = scalar_select %p202, %s201, 31
        %s204 = smul.addr %s203, 8
        %s205 = scalar_lea.vmem %s0, %s204
        %s206 = smul.u32 16, %s18
      $region20: #{tpu_custom_call.1} parent=15 // pred_fallthru
        _
      // Predicated region
      $region21: #{tpu_custom_call.1} parent=15 // pred_check
        %p207 = pneg %p69
      $region22: #{tpu_custom_call.1} parent=15 // pred_check_branch
        %209 = sbr.rel (%p207) target = $region24
      $region23: #{tpu_custom_call.1} parent=15 // pred_region
        %s210 = smul.u32 16, %s18
        %p211 = scmp.lt.s32.totalorder %s210, 31
        %s212 = scalar_select %p211, %s210, 31
        %s213 = smul.addr %s212, 8
        %s214 = scalar_lea.vmem %s1, %s213
        %s215 = smul.u32 16, %s18
      $region24: #{tpu_custom_call.1} parent=15 // pred_fallthru
        _
      // Predicated region
      $region25: #{tpu_custom_call.1} parent=15 // pred_check
        %p216 = pneg %p95
      $region26: #{tpu_custom_call.1} parent=15 // pred_check_branch
        %218 = sbr.rel (%p216) target = $region28
      $region27: #{tpu_custom_call.1} parent=15 // pred_region
        %p219 = scmp.lt.s32.totalorder %s19, 1
        %s220 = scalar_select %p219, %s19, 1
        %s221 = scalar_lea.vmem %s2, %s220
      $region28: #{tpu_custom_call.1} parent=15 // pred_fallthru
        _
      // Predicated region
      $region29: #{tpu_custom_call.1} parent=15 // pred_check
        %p222 = pneg %p121
      $region30: #{tpu_custom_call.1} parent=15 // pred_check_branch
        %224 = sbr.rel (%p222) target = $region32
      $region31: #{tpu_custom_call.1} parent=15 // pred_region
        %s225 = smul.u32 16, %s18
        %p226 = scmp.lt.s32.totalorder %s225, 31
        %s227 = scalar_select %p226, %s225, 31
        %s228 = smul.addr %s227, 8
        %s229 = scalar_lea.vmem %s3, %s228
        %s230 = smul.u32 16, %s18
      $region32: #{tpu_custom_call.1} parent=15 // pred_fallthru
        _
      // Predicated region
      $region33: #{tpu_custom_call.1} parent=15 // pred_check
        %p231 = pneg %p147
      $region34: #{tpu_custom_call.1} parent=15 // pred_check_branch
        %233 = sbr.rel (%p231) target = $region36
      $region35: #{tpu_custom_call.1} parent=15 // pred_region
        %s234 = smul.u32 16, %s19
        %p235 = scmp.lt.s32.totalorder %s234, 31
        %s236 = scalar_select %p235, %s234, 31
        %s237 = smul.addr %s236, 8
        %s238 = scalar_lea.vmem %s4, %s237
        %s239 = smul.u32 16, %s19
      $region36: #{tpu_custom_call.1} parent=15 // pred_fallthru
        _
    $region16: #{tpu_custom_call.1} parent=5 // pred_fallthru
      _
    %p240 = scmp.le.s32.totalorder 1, %s11
    %p241 = scmp.lt.s32.totalorder %s11, 5
    %p242 = pnand %p240, %p241
    %p243 = pneg %p242
    // Predicated region
    $region37: #{tpu_custom_call.1} parent=5 // pred_check
      _
    $region38: #{tpu_custom_call.1} parent=5 // pred_check_branch
      %245 = sbr.rel (%p242) target = $region40
    $region39: #{tpu_custom_call.1} parent=5 // pred_region
      %s246 = ssub.s32 %s11, 1
      %s247 = smul.u32 16, %s20
      %p248 = scmp.lt.s32.totalorder %s247, 31
      %s249 = scalar_select %p248, %s247, 31
      %s250 = smul.addr %s249, 8
      %s251 = scalar_lea.vmem %s0, %s250
      %p252 = pneg %p49
      %p253 = pneg %p46
      %s254 = smul.u32 16, %s20
      %p255 = scmp.lt.s32.totalorder %s254, 31
      %s256 = scalar_select %p255, %s254, 31
      %s257 = smul.addr %s256, 8
      %s258 = scalar_lea.vmem %s1, %s257
      %p259 = pneg %p75
      %p260 = pneg %p72
      %p261 = scmp.lt.s32.totalorder %s21, 1
      %s262 = scalar_select %p261, %s21, 1
      %s263 = scalar_lea.vmem %s2, %s262
      %p264 = pneg %p101
      %p265 = pneg %p98
      %s266 = smul.u32 16, %s20
      %p267 = scmp.lt.s32.totalorder %s266, 31
      %s268 = scalar_select %p267, %s266, 31
      %s269 = smul.addr %s268, 8
      %s270 = scalar_lea.vmem %s3, %s269
      %p271 = pneg %p127
      %p272 = pneg %p124
      %s273 = smul.u32 16, %s21
      %p274 = scmp.lt.s32.totalorder %s273, 31
      %s275 = scalar_select %p274, %s273, 31
      %s276 = smul.addr %s275, 8
      %s277 = scalar_lea.vmem %s4, %s276
      %p278 = pneg %p153
      %p279 = pneg %p150
      %p280 = pneg %p179
      %p281 = pneg %p176
      %s282 = smul.u32 16, %s20
      %p283 = scmp.lt.s32.totalorder %s282, 31
      %s284 = scalar_select %p283, %s282, 31
      %s285 = smul.addr %s284, 8
      %s286 = scalar_lea.vmem %s5, %s285
      %s287 = smul.u32 16, %s20
      %p288 = scmp.lt.s32.totalorder %s287, 31
      %s289 = scalar_select %p288, %s287, 31
      %s290 = smul.addr %s289, 8
      %s291 = scalar_lea.vmem %s0, %s290
      %s292 = smul.u32 16, %s20
      %s293 = smul.u32 16, %s20
      %p294 = scmp.lt.s32.totalorder %s293, 31
      %s295 = scalar_select %p294, %s293, 31
      %s296 = smul.addr %s295, 8
      %s297 = scalar_lea.vmem %s1, %s296
      %s298 = smul.u32 16, %s20
      %p299 = scmp.lt.s32.totalorder %s21, 1
      %s300 = scalar_select %p299, %s21, 1
      %s301 = scalar_lea.vmem %s2, %s300
      %s302 = smul.u32 16, %s20
      %p303 = scmp.lt.s32.totalorder %s302, 31
      %s304 = scalar_select %p303, %s302, 31
      %s305 = smul.addr %s304, 8
      %s306 = scalar_lea.vmem %s3, %s305
      %s307 = smul.u32 16, %s20
      %s308 = smul.u32 16, %s21
      %p309 = scmp.lt.s32.totalorder %s308, 31
      %s310 = scalar_select %p309, %s308, 31
      %s311 = smul.addr %s310, 8
      %s312 = scalar_lea.vmem %s4, %s311
      %s313 = smul.u32 16, %s21
      %s314 = smul.u32 16, %s20
      %p315 = scmp.lt.s32.totalorder %s314, 31
      %s316 = scalar_select %p315, %s314, 31
      %s317 = smul.addr %s316, 8
      %s318 = scalar_lea.vmem %s5, %s317
      %s319 = smul.u32 16, %s20
      %p320 = scmp.eq.s32.totalorder %s21, 0
      // Predicated region
      $region41: #{tpu_custom_call.1} parent=39 // pred_check
        %p321 = pneg %p320
      $region42: #{tpu_custom_call.1} parent=39 // pred_check_branch
        %323 = sbr.rel (%p321) target = $region44
      $region43: #{tpu_custom_call.1} parent=39 // pred_region
        %vm324 = vcmask 7168
        %325 = vst.msk [vmem:[#allocation2] sm:$0xff] %vm324, -inf
        %326 = vst.msk [vmem:[#allocation2 + $0x8] sm:$0xff] %vm324, -inf
        %327 = vst.msk [vmem:[#allocation2 + $0x10] sm:$0xff] %vm324, -inf
        %328 = vst.msk [vmem:[#allocation2 + $0x18] sm:$0xff] %vm324, -inf
        %329 = vst.msk [vmem:[#allocation2 + $0x20] sm:$0xff] %vm324, -inf
        %330 = vst.msk [vmem:[#allocation2 + $0x28] sm:$0xff] %vm324, -inf
        %331 = vst.msk [vmem:[#allocation2 + $0x30] sm:$0xff] %vm324, -inf
        %332 = vst.msk [vmem:[#allocation2 + $0x38] sm:$0xff] %vm324, -inf
        %333 = vst.msk [vmem:[#allocation2 + $0x40] sm:$0xff] %vm324, -inf
        %334 = vst.msk [vmem:[#allocation2 + $0x48] sm:$0xff] %vm324, -inf
        %335 = vst.msk [vmem:[#allocation2 + $0x50] sm:$0xff] %vm324, -inf
        %336 = vst.msk [vmem:[#allocation2 + $0x58] sm:$0xff] %vm324, -inf
        %337 = vst.msk [vmem:[#allocation2 + $0x60] sm:$0xff] %vm324, -inf
        %338 = vst.msk [vmem:[#allocation2 + $0x68] sm:$0xff] %vm324, -inf
        %339 = vst.msk [vmem:[#allocation2 + $0x70] sm:$0xff] %vm324, -inf
        %340 = vst.msk [vmem:[#allocation2 + $0x78] sm:$0xff] %vm324, -inf
        %341 = vst.msk [vmem:[#allocation3] sm:$0xff] %vm324, 0.0
        %342 = vst.msk [vmem:[#allocation3 + $0x8] sm:$0xff] %vm324, 0.0
        %343 = vst.msk [vmem:[#allocation3 + $0x10] sm:$0xff] %vm324, 0.0
        %344 = vst.msk [vmem:[#allocation3 + $0x18] sm:$0xff] %vm324, 0.0
        %345 = vst.msk [vmem:[#allocation3 + $0x20] sm:$0xff] %vm324, 0.0
        %346 = vst.msk [vmem:[#allocation3 + $0x28] sm:$0xff] %vm324, 0.0
        %347 = vst.msk [vmem:[#allocation3 + $0x30] sm:$0xff] %vm324, 0.0
        %348 = vst.msk [vmem:[#allocation3 + $0x38] sm:$0xff] %vm324, 0.0
        %349 = vst.msk [vmem:[#allocation3 + $0x40] sm:$0xff] %vm324, 0.0
        %350 = vst.msk [vmem:[#allocation3 + $0x48] sm:$0xff] %vm324, 0.0
        %351 = vst.msk [vmem:[#allocation3 + $0x50] sm:$0xff] %vm324, 0.0
        %352 = vst.msk [vmem:[#allocation3 + $0x58] sm:$0xff] %vm324, 0.0
        %353 = vst.msk [vmem:[#allocation3 + $0x60] sm:$0xff] %vm324, 0.0
        %354 = vst.msk [vmem:[#allocation3 + $0x68] sm:$0xff] %vm324, 0.0
        %355 = vst.msk [vmem:[#allocation3 + $0x70] sm:$0xff] %vm324, 0.0
        %356 = vst.msk [vmem:[#allocation3 + $0x78] sm:$0xff] %vm324, 0.0
        %357 = vst.msk [vmem:[#allocation4] sm:$0xff] %vm324, 0.0
        %358 = vst.msk [vmem:[#allocation4 + $0x8] sm:$0xff] %vm324, 0.0
        %359 = vst.msk [vmem:[#allocation4 + $0x10] sm:$0xff] %vm324, 0.0
        %360 = vst.msk [vmem:[#allocation4 + $0x18] sm:$0xff] %vm324, 0.0
        %361 = vst.msk [vmem:[#allocation4 + $0x20] sm:$0xff] %vm324, 0.0
        %362 = vst.msk [vmem:[#allocation4 + $0x28] sm:$0xff] %vm324, 0.0
        %363 = vst.msk [vmem:[#allocation4 + $0x30] sm:$0xff] %vm324, 0.0
        %364 = vst.msk [vmem:[#allocation4 + $0x38] sm:$0xff] %vm324, 0.0
        %365 = vst.msk [vmem:[#allocation4 + $0x40] sm:$0xff] %vm324, 0.0
        %366 = vst.msk [vmem:[#allocation4 + $0x48] sm:$0xff] %vm324, 0.0
        %367 = vst.msk [vmem:[#allocation4 + $0x50] sm:$0xff] %vm324, 0.0
        %368 = vst.msk [vmem:[#allocation4 + $0x58] sm:$0xff] %vm324, 0.0
        %369 = vst.msk [vmem:[#allocation4 + $0x60] sm:$0xff] %vm324, 0.0
        %370 = vst.msk [vmem:[#allocation4 + $0x68] sm:$0xff] %vm324, 0.0
        %371 = vst.msk [vmem:[#allocation4 + $0x70] sm:$0xff] %vm324, 0.0
        %372 = vst.msk [vmem:[#allocation4 + $0x78] sm:$0xff] %vm324, 0.0
        %373 = vst.msk [vmem:[#allocation5] sm:$0xff] %vm324, 0.0
        %374 = vst.msk [vmem:[#allocation5 + $0x8] sm:$0xff] %vm324, 0.0
        %375 = vst.msk [vmem:[#allocation5 + $0x10] sm:$0xff] %vm324, 0.0
        %376 = vst.msk [vmem:[#allocation5 + $0x18] sm:$0xff] %vm324, 0.0
        %377 = vst.msk [vmem:[#allocation5 + $0x20] sm:$0xff] %vm324, 0.0
        %378 = vst.msk [vmem:[#allocation5 + $0x28] sm:$0xff] %vm324, 0.0
        %379 = vst.msk [vmem:[#allocation5 + $0x30] sm:$0xff] %vm324, 0.0
        %380 = vst.msk [vmem:[#allocation5 + $0x38] sm:$0xff] %vm324, 0.0
        %381 = vst.msk [vmem:[#allocation5 + $0x40] sm:$0xff] %vm324, 0.0
        %382 = vst.msk [vmem:[#allocation5 + $0x48] sm:$0xff] %vm324, 0.0
        %383 = vst.msk [vmem:[#allocation5 + $0x50] sm:$0xff] %vm324, 0.0
        %384 = vst.msk [vmem:[#allocation5 + $0x58] sm:$0xff] %vm324, 0.0
        %385 = vst.msk [vmem:[#allocation5 + $0x60] sm:$0xff] %vm324, 0.0
        %386 = vst.msk [vmem:[#allocation5 + $0x68] sm:$0xff] %vm324, 0.0
        %387 = vst.msk [vmem:[#allocation5 + $0x70] sm:$0xff] %vm324, 0.0
        %388 = vst.msk [vmem:[#allocation5 + $0x78] sm:$0xff] %vm324, 0.0
      $region44: #{tpu_custom_call.1} parent=39 // pred_fallthru
        _
      %v389 = vld [vmem:[%s306] sm:$0xff]
      %v390 = vld [vmem:[%s306 + $0x8] sm:$0xff]
      %v391 = vld [vmem:[%s306 + $0x10] sm:$0xff]
      %v392 = vld [vmem:[%s306 + $0x18] sm:$0xff]
      %v393 = vld [vmem:[%s306 + $0x20] sm:$0xff]
      %v394 = vld [vmem:[%s306 + $0x28] sm:$0xff]
      %v395 = vld [vmem:[%s306 + $0x30] sm:$0xff]
      %v396 = vld [vmem:[%s306 + $0x38] sm:$0xff]
      %v397 = vld [vmem:[%s306 + $0x40] sm:$0xff]
      %v398 = vld [vmem:[%s306 + $0x48] sm:$0xff]
      %v399 = vld [vmem:[%s306 + $0x50] sm:$0xff]
      %v400 = vld [vmem:[%s306 + $0x58] sm:$0xff]
      %v401 = vld [vmem:[%s306 + $0x60] sm:$0xff]
      %v402 = vld [vmem:[%s306 + $0x68] sm:$0xff]
      %v403 = vld [vmem:[%s306 + $0x70] sm:$0xff]
      %v404 = vld [vmem:[%s306 + $0x78] sm:$0xff]
      %v405 = vld [vmem:[%s312] sm:$0xff]
      %v406 = vld [vmem:[%s312 + $0x8] sm:$0xff]
      %v407 = vld [vmem:[%s312 + $0x10] sm:$0xff]
      %v408 = vld [vmem:[%s312 + $0x18] sm:$0xff]
      %v409 = vld [vmem:[%s312 + $0x20] sm:$0xff]
      %v410 = vld [vmem:[%s312 + $0x28] sm:$0xff]
      %v411 = vld [vmem:[%s312 + $0x30] sm:$0xff]
      %v412 = vld [vmem:[%s312 + $0x38] sm:$0xff]
      %v413 = vld [vmem:[%s312 + $0x40] sm:$0xff]
      %v414 = vld [vmem:[%s312 + $0x48] sm:$0xff]
      %v415 = vld [vmem:[%s312 + $0x50] sm:$0xff]
      %v416 = vld [vmem:[%s312 + $0x58] sm:$0xff]
      %v417 = vld [vmem:[%s312 + $0x60] sm:$0xff]
      %v418 = vld [vmem:[%s312 + $0x68] sm:$0xff]
      %v419 = vld [vmem:[%s312 + $0x70] sm:$0xff]
      %v420 = vld [vmem:[%s312 + $0x78] sm:$0xff]
      %v421 = vmul.f32 %v389, %v389
      %v422 = vmul.f32 %v390, %v390
      %v423 = vmul.f32 %v391, %v391
      %v424 = vmul.f32 %v392, %v392
      %v425 = vmul.f32 %v393, %v393
      %v426 = vmul.f32 %v394, %v394
      %v427 = vmul.f32 %v395, %v395
      %v428 = vmul.f32 %v396, %v396
      %v429 = vmul.f32 %v397, %v397
      %v430 = vmul.f32 %v398, %v398
      %v431 = vmul.f32 %v399, %v399
      %v432 = vmul.f32 %v400, %v400
      %v433 = vmul.f32 %v401, %v401
      %v434 = vmul.f32 %v402, %v402
      %v435 = vmul.f32 %v403, %v403
      %v436 = vmul.f32 %v404, %v404
      %vm437 = vcmask 261120
      %v438 = vsel %vm437, %v421, 0.0
      %439 = vadd.xlane.f32.xlu0 %v438
      %v440 = vpop.xlane.xlu0 %439
      %v441 = vsel %vm437, %v422, 0.0
      %442 = vadd.xlane.f32.xlu0 %v441
      %v443 = vpop.xlane.xlu0 %442
      %v444 = vsel %vm437, %v423, 0.0
      %445 = vadd.xlane.f32.xlu0 %v444
      %v446 = vpop.xlane.xlu0 %445
      %v447 = vsel %vm437, %v424, 0.0
      %448 = vadd.xlane.f32.xlu0 %v447
      %v449 = vpop.xlane.xlu0 %448
      %v450 = vsel %vm437, %v425, 0.0
      %451 = vadd.xlane.f32.xlu0 %v450
      %v452 = vpop.xlane.xlu0 %451
      %v453 = vsel %vm437, %v426, 0.0
      %454 = vadd.xlane.f32.xlu0 %v453
      %v455 = vpop.xlane.xlu0 %454
      %v456 = vsel %vm437, %v427, 0.0
      %457 = vadd.xlane.f32.xlu0 %v456
      %v458 = vpop.xlane.xlu0 %457
      %v459 = vsel %vm437, %v428, 0.0
      %460 = vadd.xlane.f32.xlu0 %v459
      %v461 = vpop.xlane.xlu0 %460
      %v462 = vsel %vm437, %v429, 0.0
      %463 = vadd.xlane.f32.xlu0 %v462
      %v464 = vpop.xlane.xlu0 %463
      %v465 = vsel %vm437, %v430, 0.0
      %466 = vadd.xlane.f32.xlu0 %v465
      %v467 = vpop.xlane.xlu0 %466
      %v468 = vsel %vm437, %v431, 0.0
      %469 = vadd.xlane.f32.xlu0 %v468
      %v470 = vpop.xlane.xlu0 %469
      %v471 = vsel %vm437, %v432, 0.0
      %472 = vadd.xlane.f32.xlu0 %v471
      %v473 = vpop.xlane.xlu0 %472
      %v474 = vsel %vm437, %v433, 0.0
      %475 = vadd.xlane.f32.xlu0 %v474
      %v476 = vpop.xlane.xlu0 %475
      %v477 = vsel %vm437, %v434, 0.0
      %478 = vadd.xlane.f32.xlu0 %v477
      %v479 = vpop.xlane.xlu0 %478
      %v480 = vsel %vm437, %v435, 0.0
      %481 = vadd.xlane.f32.xlu0 %v480
      %v482 = vpop.xlane.xlu0 %481
      %v483 = vsel %vm437, %v436, 0.0
      %484 = vadd.xlane.f32.xlu0 %v483
      %v485 = vpop.xlane.xlu0 %484
      %v486 = vadd.f32 %v440, 1e-12
      %v487 = vadd.f32 %v443, 1e-12
      %v488 = vadd.f32 %v446, 1e-12
      %v489 = vadd.f32 %v449, 1e-12
      %v490 = vadd.f32 %v452, 1e-12
      %v491 = vadd.f32 %v455, 1e-12
      %v492 = vadd.f32 %v458, 1e-12
      %v493 = vadd.f32 %v461, 1e-12
      %v494 = vadd.f32 %v464, 1e-12
      %v495 = vadd.f32 %v467, 1e-12
      %v496 = vadd.f32 %v470, 1e-12
      %v497 = vadd.f32 %v473, 1e-12
      %v498 = vadd.f32 %v476, 1e-12
      %v499 = vadd.f32 %v479, 1e-12
      %v500 = vadd.f32 %v482, 1e-12
      %v501 = vadd.f32 %v485, 1e-12
      %v502 = vrsqrt.pop %v486
      %v503 = vrsqrt.pop %v487
      %v504 = vrsqrt.pop %v488
      %v505 = vrsqrt.pop %v489
      %v506 = vrsqrt.pop %v490
      %v507 = vrsqrt.pop %v491
      %v508 = vrsqrt.pop %v492
      %v509 = vrsqrt.pop %v493
      %v510 = vrsqrt.pop %v494
      %v511 = vrsqrt.pop %v495
      %v512 = vrsqrt.pop %v496
      %v513 = vrsqrt.pop %v497
      %v514 = vrsqrt.pop %v498
      %v515 = vrsqrt.pop %v499
      %v516 = vrsqrt.pop %v500
      %v517 = vrsqrt.pop %v501
      %v518 = vmul.f32 %v389, %v502
      %v519 = vmul.f32 %v390, %v503
      %v520 = vmul.f32 %v391, %v504
      %v521 = vmul.f32 %v392, %v505
      %v522 = vmul.f32 %v393, %v506
      %v523 = vmul.f32 %v394, %v507
      %v524 = vmul.f32 %v395, %v508
      %v525 = vmul.f32 %v396, %v509
      %v526 = vmul.f32 %v397, %v510
      %v527 = vmul.f32 %v398, %v511
      %v528 = vmul.f32 %v399, %v512
      %v529 = vmul.f32 %v400, %v513
      %v530 = vmul.f32 %v401, %v514
      %v531 = vmul.f32 %v402, %v515
      %v532 = vmul.f32 %v403, %v516
      %v533 = vmul.f32 %v404, %v517
      %v534 = vmul.f32 %v405, %v405
      %v535 = vmul.f32 %v406, %v406
      %v536 = vmul.f32 %v407, %v407
      %v537 = vmul.f32 %v408, %v408
      %v538 = vmul.f32 %v409, %v409
      %v539 = vmul.f32 %v410, %v410
      %v540 = vmul.f32 %v411, %v411
      %v541 = vmul.f32 %v412, %v412
      %v542 = vmul.f32 %v413, %v413
      %v543 = vmul.f32 %v414, %v414
      %v544 = vmul.f32 %v415, %v415
      %v545 = vmul.f32 %v416, %v416
      %v546 = vmul.f32 %v417, %v417
      %v547 = vmul.f32 %v418, %v418
      %v548 = vmul.f32 %v419, %v419
      %v549 = vmul.f32 %v420, %v420
      %v550 = vsel %vm437, %v534, 0.0
      %551 = vadd.xlane.f32.xlu0 %v550
      %v552 = vpop.xlane.xlu0 %551
      %v553 = vsel %vm437, %v535, 0.0
      %554 = vadd.xlane.f32.xlu0 %v553
      %v555 = vpop.xlane.xlu0 %554
      %v556 = vsel %vm437, %v536, 0.0
      %557 = vadd.xlane.f32.xlu0 %v556
      %v558 = vpop.xlane.xlu0 %557
      %v559 = vsel %vm437, %v537, 0.0
      %560 = vadd.xlane.f32.xlu0 %v559
      %v561 = vpop.xlane.xlu0 %560
      %v562 = vsel %vm437, %v538, 0.0
      %563 = vadd.xlane.f32.xlu0 %v562
      %v564 = vpop.xlane.xlu0 %563
      %v565 = vsel %vm437, %v539, 0.0
      %566 = vadd.xlane.f32.xlu0 %v565
      %v567 = vpop.xlane.xlu0 %566
      %v568 = vsel %vm437, %v540, 0.0
      %569 = vadd.xlane.f32.xlu0 %v568
      %v570 = vpop.xlane.xlu0 %569
      %v571 = vsel %vm437, %v541, 0.0
      %572 = vadd.xlane.f32.xlu0 %v571
      %v573 = vpop.xlane.xlu0 %572
      %v574 = vsel %vm437, %v542, 0.0
      %575 = vadd.xlane.f32.xlu0 %v574
      %v576 = vpop.xlane.xlu0 %575
      %v577 = vsel %vm437, %v543, 0.0
      %578 = vadd.xlane.f32.xlu0 %v577
      %v579 = vpop.xlane.xlu0 %578
      %v580 = vsel %vm437, %v544, 0.0
      %581 = vadd.xlane.f32.xlu0 %v580
      %v582 = vpop.xlane.xlu0 %581
      %v583 = vsel %vm437, %v545, 0.0
      %584 = vadd.xlane.f32.xlu0 %v583
      %v585 = vpop.xlane.xlu0 %584
      %v586 = vsel %vm437, %v546, 0.0
      %587 = vadd.xlane.f32.xlu0 %v586
      %v588 = vpop.xlane.xlu0 %587
      %v589 = vsel %vm437, %v547, 0.0
      %590 = vadd.xlane.f32.xlu0 %v589
      %v591 = vpop.xlane.xlu0 %590
      %v592 = vsel %vm437, %v548, 0.0
      %593 = vadd.xlane.f32.xlu0 %v592
      %v594 = vpop.xlane.xlu0 %593
      %v595 = vsel %vm437, %v549, 0.0
      %596 = vadd.xlane.f32.xlu0 %v595
      %v597 = vpop.xlane.xlu0 %596
      %v598 = vadd.f32 %v552, 1e-12
      %v599 = vadd.f32 %v555, 1e-12
      %v600 = vadd.f32 %v558, 1e-12
      %v601 = vadd.f32 %v561, 1e-12
      %v602 = vadd.f32 %v564, 1e-12
      %v603 = vadd.f32 %v567, 1e-12
      %v604 = vadd.f32 %v570, 1e-12
      %v605 = vadd.f32 %v573, 1e-12
      %v606 = vadd.f32 %v576, 1e-12
      %v607 = vadd.f32 %v579, 1e-12
      %v608 = vadd.f32 %v582, 1e-12
      %v609 = vadd.f32 %v585, 1e-12
      %v610 = vadd.f32 %v588, 1e-12
      %v611 = vadd.f32 %v591, 1e-12
      %v612 = vadd.f32 %v594, 1e-12
      %v613 = vadd.f32 %v597, 1e-12
      %v614 = vrsqrt.pop %v598
      %v615 = vrsqrt.pop %v599
      %v616 = vrsqrt.pop %v600
      %v617 = vrsqrt.pop %v601
      %v618 = vrsqrt.pop %v602
      %v619 = vrsqrt.pop %v603
      %v620 = vrsqrt.pop %v604
      %v621 = vrsqrt.pop %v605
      %v622 = vrsqrt.pop %v606
      %v623 = vrsqrt.pop %v607
      %v624 = vrsqrt.pop %v608
      %v625 = vrsqrt.pop %v609
      %v626 = vrsqrt.pop %v610
      %v627 = vrsqrt.pop %v611
      %v628 = vrsqrt.pop %v612
      %v629 = vrsqrt.pop %v613
      %v630 = vmul.f32 %v405, %v614
      %v631 = vmul.f32 %v406, %v615
      %v632 = vmul.f32 %v407, %v616
      %v633 = vmul.f32 %v408, %v617
      %v634 = vmul.f32 %v409, %v618
      %v635 = vmul.f32 %v410, %v619
      %v636 = vmul.f32 %v411, %v620
      %v637 = vmul.f32 %v412, %v621
      %v638 = vmul.f32 %v413, %v622
      %v639 = vmul.f32 %v414, %v623
      %v640 = vmul.f32 %v415, %v624
      %v641 = vmul.f32 %v416, %v625
      %v642 = vmul.f32 %v417, %v626
      %v643 = vmul.f32 %v418, %v627
      %v644 = vmul.f32 %v419, %v628
      %v645 = vmul.f32 %v420, %v629
      %v647 = vsel %vm437, %v518, 0
      %v650 = vsel %vm437, %v519, 0
      %v653 = vsel %vm437, %v520, 0
      %v656 = vsel %vm437, %v521, 0
      %v659 = vsel %vm437, %v522, 0
      %v662 = vsel %vm437, %v523, 0
      %v665 = vsel %vm437, %v524, 0
      %v668 = vsel %vm437, %v525, 0
      %v671 = vsel %vm437, %v526, 0
      %v674 = vsel %vm437, %v527, 0
      %v677 = vsel %vm437, %v528, 0
      %v680 = vsel %vm437, %v529, 0
      %v683 = vsel %vm437, %v530, 0
      %v686 = vsel %vm437, %v531, 0
      %v689 = vsel %vm437, %v532, 0
      %v692 = vsel %vm437, %v533, 0
      %v695 = vsel %vm437, %v630, 0
      %v698 = vsel %vm437, %v631, 0
      %v701 = vsel %vm437, %v632, 0
      %v704 = vsel %vm437, %v633, 0
      %v707 = vsel %vm437, %v634, 0
      %v710 = vsel %vm437, %v635, 0
      %v713 = vsel %vm437, %v636, 0
      %v716 = vsel %vm437, %v637, 0
      %v719 = vsel %vm437, %v638, 0
      %v722 = vsel %vm437, %v639, 0
      %v725 = vsel %vm437, %v640, 0
      %v728 = vsel %vm437, %v641, 0
      %v731 = vsel %vm437, %v642, 0
      %v734 = vsel %vm437, %v643, 0
      %v737 = vsel %vm437, %v644, 0
      %v740 = vsel %vm437, %v645, 0
      %742 = vmatprep.subr.mxu0 0.0
      %743 = vmatpush1.xpose.msra.mxu0 %v695
      %744 = vmatprep.subr.mxu0 0.0
      %745 = vmatpush1.xpose.msra.mxu0 %v698
      %746 = vmatprep.subr.mxu0 0.0
      %747 = vmatpush1.xpose.msra.mxu0 %v701
      %748 = vmatprep.subr.mxu0 0.0
      %749 = vmatpush1.xpose.msra.mxu0 %v704
      %750 = vmatprep.subr.mxu0 0.0
      %751 = vmatpush1.xpose.msra.mxu0 %v707
      %752 = vmatprep.subr.mxu0 0.0
      %753 = vmatpush1.xpose.msra.mxu0 %v710
      %754 = vmatprep.subr.mxu0 0.0
      %755 = vmatpush1.xpose.msra.mxu0 %v713
      %756 = vmatprep.subr.mxu0 0.0
      %757 = vmatpush1.xpose.msra.mxu0 %v716
      %758 = vmatprep.subr.mxu0 0.0
      %759 = vmatpush1.xpose.msra.mxu0 %v719
      %760 = vmatprep.subr.mxu0 0.0
      %761 = vmatpush1.xpose.msra.mxu0 %v722
      %762 = vmatprep.subr.mxu0 0.0
      %763 = vmatpush1.xpose.msra.mxu0 %v725
      %764 = vmatprep.subr.mxu0 0.0
      %765 = vmatpush1.xpose.msra.mxu0 %v728
      %766 = vmatprep.subr.mxu0 0.0
      %767 = vmatpush1.xpose.msra.mxu0 %v731
      %768 = vmatprep.subr.mxu0 0.0
      %769 = vmatpush1.xpose.msra.mxu0 %v734
      %770 = vmatprep.subr.mxu0 0.0
      %771 = vmatpush1.xpose.msra.mxu0 %v737
      %772 = vmatprep.subr.mxu0 0.0
      %773 = vmatpush1.xpose.msra.mxu0 %v740
      %774 = vmatprep.subr.mxu0 0.0
      %775 = vmatpush1.xpose.msra.mxu0 0.0
      %776 = vmatprep.subr.mxu0 0.0
      %777 = vmatpush1.xpose.msra.mxu0 0.0
      %778 = vmatprep.subr.mxu0 0.0
      %779 = vmatpush1.xpose.msra.mxu0 0.0
      %780 = vmatprep.subr.mxu0 0.0
      %781 = vmatpush1.xpose.msra.mxu0 0.0
      %782 = vmatprep.subr.mxu0 0.0
      %783 = vmatpush1.xpose.msra.mxu0 0.0
      %784 = vmatprep.subr.mxu0 0.0
      %785 = vmatpush1.xpose.msra.mxu0 0.0
      %786 = vmatprep.subr.mxu0 0.0
      %787 = vmatpush1.xpose.msra.mxu0 0.0
      %788 = vmatprep.subr.mxu0 0.0
      %789 = vmatpush1.xpose.msra.mxu0 0.0
      %790 = vmatprep.subr.mxu0 0.0
      %791 = vmatpush1.xpose.msra.mxu0 0.0
      %792 = vmatprep.subr.mxu0 0.0
      %793 = vmatpush1.xpose.msra.mxu0 0.0
      %794 = vmatprep.subr.mxu0 0.0
      %795 = vmatpush1.xpose.msra.mxu0 0.0
      %796 = vmatprep.subr.mxu0 0.0
      %797 = vmatpush1.xpose.msra.mxu0 0.0
      %798 = vmatprep.subr.mxu0 0.0
      %799 = vmatpush1.xpose.msra.mxu0 0.0
      %800 = vmatprep.subr.mxu0 0.0
      %801 = vmatpush1.xpose.msra.mxu0 0.0
      %802 = vmatprep.subr.mxu0 0.0
      %803 = vmatpush1.xpose.msra.mxu0 0.0
      %804 = vmatprep.subr.mxu0 0.0
      %805 = vmatpush1.xpose.msra.mxu0 0.0
      %806 = vmatprep.mubr.f32.mxu0 0.0
      %807 = vmatmul.mubr.f32.gmra.mrb[0].mxu0 %v647
      %v808 = vpop.f32.mrb[0].mxu0
      %v809 = vadd.f32 0.0, %v808
      %v810 = vpop.f32.mrb[0].mxu0
      %811 = vmatprep.mubr.f32.mxu0 0.0
      %812 = vmatmul.mubr.f32.gmra.mrb[0].mxu0 %v650
      %v813 = vpop.f32.mrb[0].mxu0
      %v814 = vadd.f32 0.0, %v813
      %v815 = vpop.f32.mrb[0].mxu0
      %816 = vmatprep.mubr.f32.mxu0 0.0
      %817 = vmatmul.mubr.f32.gmra.mrb[0].mxu0 %v653
      %v818 = vpop.f32.mrb[0].mxu0
      %v819 = vadd.f32 0.0, %v818
      %v820 = vpop.f32.mrb[0].mxu0
      %821 = vmatprep.mubr.f32.mxu0 0.0
      %822 = vmatmul.mubr.f32.gmra.mrb[0].mxu0 %v656
      %v823 = vpop.f32.mrb[0].mxu0
      %v824 = vadd.f32 0.0, %v823
      %v825 = vpop.f32.mrb[0].mxu0
      %826 = vmatprep.mubr.f32.mxu0 0.0
      %827 = vmatmul.mubr.f32.gmra.mrb[0].mxu0 %v659
      %v828 = vpop.f32.mrb[0].mxu0
      %v829 = vadd.f32 0.0, %v828
      %v830 = vpop.f32.mrb[0].mxu0
      %831 = vmatprep.mubr.f32.mxu0 0.0
      %832 = vmatmul.mubr.f32.gmra.mrb[0].mxu0 %v662
      %v833 = vpop.f32.mrb[0].mxu0
      %v834 = vadd.f32 0.0, %v833
      %v835 = vpop.f32.mrb[0].mxu0
      %836 = vmatprep.mubr.f32.mxu0 0.0
      %837 = vmatmul.mubr.f32.gmra.mrb[0].mxu0 %v665
      %v838 = vpop.f32.mrb[0].mxu0
      %v839 = vadd.f32 0.0, %v838
      %v840 = vpop.f32.mrb[0].mxu0
      %841 = vmatprep.mubr.f32.mxu0 0.0
      %842 = vmatmul.mubr.f32.gmra.mrb[0].mxu0 %v668
      %v843 = vpop.f32.mrb[0].mxu0
      %v844 = vadd.f32 0.0, %v843
      %v845 = vpop.f32.mrb[0].mxu0
      %846 = vmatprep.mubr.f32.mxu0 0.0
      %847 = vmatmul.mubr.f32.gmra.mrb[0].mxu0 %v671
      %v848 = vpop.f32.mrb[0].mxu0
      %v849 = vadd.f32 0.0, %v848
      %v850 = vpop.f32.mrb[0].mxu0
      %851 = vmatprep.mubr.f32.mxu0 0.0
      %852 = vmatmul.mubr.f32.gmra.mrb[0].mxu0 %v674
      %v853 = vpop.f32.mrb[0].mxu0
      %v854 = vadd.f32 0.0, %v853
      %v855 = vpop.f32.mrb[0].mxu0
      %856 = vmatprep.mubr.f32.mxu0 0.0
      %857 = vmatmul.mubr.f32.gmra.mrb[0].mxu0 %v677
      %v858 = vpop.f32.mrb[0].mxu0
      %v859 = vadd.f32 0.0, %v858
      %v860 = vpop.f32.mrb[0].mxu0
      %861 = vmatprep.mubr.f32.mxu0 0.0
      %862 = vmatmul.mubr.f32.gmra.mrb[0].mxu0 %v680
      %v863 = vpop.f32.mrb[0].mxu0
      %v864 = vadd.f32 0.0, %v863
      %v865 = vpop.f32.mrb[0].mxu0
      %866 = vmatprep.mubr.f32.mxu0 0.0
      %867 = vmatmul.mubr.f32.gmra.mrb[0].mxu0 %v683
      %v868 = vpop.f32.mrb[0].mxu0
      %v869 = vadd.f32 0.0, %v868
      %v870 = vpop.f32.mrb[0].mxu0
      %871 = vmatprep.mubr.f32.mxu0 0.0
      %872 = vmatmul.mubr.f32.gmra.mrb[0].mxu0 %v686
      %v873 = vpop.f32.mrb[0].mxu0
      %v874 = vadd.f32 0.0, %v873
      %v875 = vpop.f32.mrb[0].mxu0
      %876 = vmatprep.mubr.f32.mxu0 0.0
      %877 = vmatmul.mubr.f32.gmra.mrb[0].mxu0 %v689
      %v878 = vpop.f32.mrb[0].mxu0
      %v879 = vadd.f32 0.0, %v878
      %v880 = vpop.f32.mrb[0].mxu0
      %881 = vmatprep.mubr.f32.mxu0 0.0
      %882 = vmatmul.mubr.f32.gmra.mrb[0].mxu0 %v692
      %v883 = vpop.f32.mrb[0].mxu0
      %v884 = vadd.f32 0.0, %v883
      %v885 = vpop.f32.mrb[0].mxu0
      %886 = vdwg.mxu0
      %v887 = vmul.f32 %v809, 14.285714
      %v888 = vmul.f32 %v814, 14.285714
      %v889 = vmul.f32 %v819, 14.285714
      %v890 = vmul.f32 %v824, 14.285714
      %v891 = vmul.f32 %v829, 14.285714
      %v892 = vmul.f32 %v834, 14.285714
      %v893 = vmul.f32 %v839, 14.285714
      %v894 = vmul.f32 %v844, 14.285714
      %v895 = vmul.f32 %v849, 14.285714
      %v896 = vmul.f32 %v854, 14.285714
      %v897 = vmul.f32 %v859, 14.285714
      %v898 = vmul.f32 %v864, 14.285714
      %v899 = vmul.f32 %v869, 14.285714
      %v900 = vmul.f32 %v874, 14.285714
      %v901 = vmul.f32 %v879, 14.285714
      %v902 = vmul.f32 %v884, 14.285714
      %v903 = vld [vmem:[%s297] sm:$0xff]
      %v904 = vld [vmem:[%s297 + $0x8] sm:$0xff]
      %v905 = vld [vmem:[%s297 + $0x10] sm:$0xff]
      %v906 = vld [vmem:[%s297 + $0x18] sm:$0xff]
      %v907 = vld [vmem:[%s297 + $0x20] sm:$0xff]
      %v908 = vld [vmem:[%s297 + $0x28] sm:$0xff]
      %v909 = vld [vmem:[%s297 + $0x30] sm:$0xff]
      %v910 = vld [vmem:[%s297 + $0x38] sm:$0xff]
      %v911 = vld [vmem:[%s297 + $0x40] sm:$0xff]
      %v912 = vld [vmem:[%s297 + $0x48] sm:$0xff]
      %v913 = vld [vmem:[%s297 + $0x50] sm:$0xff]
      %v914 = vld [vmem:[%s297 + $0x58] sm:$0xff]
      %v915 = vld [vmem:[%s297 + $0x60] sm:$0xff]
      %v916 = vld [vmem:[%s297 + $0x68] sm:$0xff]
      %v917 = vld [vmem:[%s297 + $0x70] sm:$0xff]
      %v918 = vld [vmem:[%s297 + $0x78] sm:$0xff]
      %v919 = vld [vmem:[%s301] sm:$0x1]
      %920 = vset.pattern.permute.xlu0 0
      %921 = vperm.xlu0 %920, %v903
      %v922 = vpop.permute.xlu0 %921
      %923 = vset.pattern.permute.xlu0 0
      %924 = vperm.xlu0 %923, %v904
      %v925 = vpop.permute.xlu0 %924
      %926 = vset.pattern.permute.xlu0 0
      %927 = vperm.xlu0 %926, %v905
      %v928 = vpop.permute.xlu0 %927
      %929 = vset.pattern.permute.xlu0 0
      %930 = vperm.xlu0 %929, %v906
      %v931 = vpop.permute.xlu0 %930
      %932 = vset.pattern.permute.xlu0 0
      %933 = vperm.xlu0 %932, %v907
      %v934 = vpop.permute.xlu0 %933
      %935 = vset.pattern.permute.xlu0 0
      %936 = vperm.xlu0 %935, %v908
      %v937 = vpop.permute.xlu0 %936
      %938 = vset.pattern.permute.xlu0 0
      %939 = vperm.xlu0 %938, %v909
      %v940 = vpop.permute.xlu0 %939
      %941 = vset.pattern.permute.xlu0 0
      %942 = vperm.xlu0 %941, %v910
      %v943 = vpop.permute.xlu0 %942
      %944 = vset.pattern.permute.xlu0 0
      %945 = vperm.xlu0 %944, %v911
      %v946 = vpop.permute.xlu0 %945
      %947 = vset.pattern.permute.xlu0 0
      %948 = vperm.xlu0 %947, %v912
      %v949 = vpop.permute.xlu0 %948
      %950 = vset.pattern.permute.xlu0 0
      %951 = vperm.xlu0 %950, %v913
      %v952 = vpop.permute.xlu0 %951
      %953 = vset.pattern.permute.xlu0 0
      %954 = vperm.xlu0 %953, %v914
      %v955 = vpop.permute.xlu0 %954
      %956 = vset.pattern.permute.xlu0 0
      %957 = vperm.xlu0 %956, %v915
      %v958 = vpop.permute.xlu0 %957
      %959 = vset.pattern.permute.xlu0 0
      %960 = vperm.xlu0 %959, %v916
      %v961 = vpop.permute.xlu0 %960
      %962 = vset.pattern.permute.xlu0 0
      %963 = vperm.xlu0 %962, %v917
      %v964 = vpop.permute.xlu0 %963
      %965 = vset.pattern.permute.xlu0 0
      %966 = vperm.xlu0 %965, %v918
      %v967 = vpop.permute.xlu0 %966
      %v968 = vlaneseq
      %v969 = vshrl.u32 %v968, 7
      %v970 = vsub.s32 0, %v969
      %v971 = vrot.slane %v919, %v970
      %vm972 = vcmp.eq.s32.totalorder %v922, %v971
      %vm973 = vcmp.eq.s32.totalorder %v925, %v971
      %vm974 = vcmp.eq.s32.totalorder %v928, %v971
      %vm975 = vcmp.eq.s32.totalorder %v931, %v971
      %vm976 = vcmp.eq.s32.totalorder %v934, %v971
      %vm977 = vcmp.eq.s32.totalorder %v937, %v971
      %vm978 = vcmp.eq.s32.totalorder %v940, %v971
      %vm979 = vcmp.eq.s32.totalorder %v943, %v971
      %vm980 = vcmp.eq.s32.totalorder %v946, %v971
      %vm981 = vcmp.eq.s32.totalorder %v949, %v971
      %vm982 = vcmp.eq.s32.totalorder %v952, %v971
      %vm983 = vcmp.eq.s32.totalorder %v955, %v971
      %vm984 = vcmp.eq.s32.totalorder %v958, %v971
      %vm985 = vcmp.eq.s32.totalorder %v961, %v971
      %vm986 = vcmp.eq.s32.totalorder %v964, %v971
      %vm987 = vcmp.eq.s32.totalorder %v967, %v971
      %v988 = vlaneseq
      %v989 = vshrl.u32 %v988, 7
      %v990 = vadd.s32 %v989, 8
      %v991 = vadd.s32 %v989, 16
      %v992 = vadd.s32 %v989, 24
      %v993 = vadd.s32 %v989, 32
      %v994 = vadd.s32 %v989, 40
      %v995 = vadd.s32 %v989, 48
      %v996 = vadd.s32 %v989, 56
      %v997 = vadd.s32 %v989, 64
      %v998 = vadd.s32 %v989, 72
      %v999 = vadd.s32 %v989, 80
      %v1000 = vadd.s32 %v989, 88
      %v1001 = vadd.s32 %v989, 96
      %v1002 = vadd.s32 %v989, 104
      %v1003 = vadd.s32 %v989, 112
      %v1004 = vadd.s32 %v989, 120
      %v1005 = vlaneseq
      %v1006 = vand.u32 %v1005, 127
      %v1007 = vsub.s32 %v989, %v1006
      %v1008 = vsub.s32 %v990, %v1006
      %v1009 = vsub.s32 %v991, %v1006
      %v1010 = vsub.s32 %v992, %v1006
      %v1011 = vsub.s32 %v993, %v1006
      %v1012 = vsub.s32 %v994, %v1006
      %v1013 = vsub.s32 %v995, %v1006
      %v1014 = vsub.s32 %v996, %v1006
      %v1015 = vsub.s32 %v997, %v1006
      %v1016 = vsub.s32 %v998, %v1006
      %v1017 = vsub.s32 %v999, %v1006
      %v1018 = vsub.s32 %v1000, %v1006
      %v1019 = vsub.s32 %v1001, %v1006
      %v1020 = vsub.s32 %v1002, %v1006
      %v1021 = vsub.s32 %v1003, %v1006
      %v1022 = vsub.s32 %v1004, %v1006
      %s1023 = ssub.s32 %s21, %s20
      %s1024 = smul.u32 %s1023, 128
      %v1025 = vstv %s1024
      %vm1026 = vcmp.ne.s32.totalorder %v1007, %v1025
      %vm1027 = vcmp.ne.s32.totalorder %v1008, %v1025
      %vm1028 = vcmp.ne.s32.totalorder %v1009, %v1025
      %vm1029 = vcmp.ne.s32.totalorder %v1010, %v1025
      %vm1030 = vcmp.ne.s32.totalorder %v1011, %v1025
      %vm1031 = vcmp.ne.s32.totalorder %v1012, %v1025
      %vm1032 = vcmp.ne.s32.totalorder %v1013, %v1025
      %vm1033 = vcmp.ne.s32.totalorder %v1014, %v1025
      %vm1034 = vcmp.ne.s32.totalorder %v1015, %v1025
      %vm1035 = vcmp.ne.s32.totalorder %v1016, %v1025
      %vm1036 = vcmp.ne.s32.totalorder %v1017, %v1025
      %vm1037 = vcmp.ne.s32.totalorder %v1018, %v1025
      %vm1038 = vcmp.ne.s32.totalorder %v1019, %v1025
      %vm1039 = vcmp.ne.s32.totalorder %v1020, %v1025
      %vm1040 = vcmp.ne.s32.totalorder %v1021, %v1025
      %vm1041 = vcmp.ne.s32.totalorder %v1022, %v1025
      %vm1042 = vmand %vm972, %vm1026
      %vm1043 = vmand %vm973, %vm1027
      %vm1044 = vmand %vm974, %vm1028
      %vm1045 = vmand %vm975, %vm1029
      %vm1046 = vmand %vm976, %vm1030
      %vm1047 = vmand %vm977, %vm1031
      %vm1048 = vmand %vm978, %vm1032
      %vm1049 = vmand %vm979, %vm1033
      %vm1050 = vmand %vm980, %vm1034
      %vm1051 = vmand %vm981, %vm1035
      %vm1052 = vmand %vm982, %vm1036
      %vm1053 = vmand %vm983, %vm1037
      %vm1054 = vmand %vm984, %vm1038
      %vm1055 = vmand %vm985, %vm1039
      %vm1056 = vmand %vm986, %vm1040
      %vm1057 = vmand %vm987, %vm1041
      %v1058 = vld [vmem:[#allocation2] sm:$0xff]
      %v1059 = vld [vmem:[#allocation2 + $0x8] sm:$0xff]
      %v1060 = vld [vmem:[#allocation2 + $0x10] sm:$0xff]
      %v1061 = vld [vmem:[#allocation2 + $0x18] sm:$0xff]
      %v1062 = vld [vmem:[#allocation2 + $0x20] sm:$0xff]
      %v1063 = vld [vmem:[#allocation2 + $0x28] sm:$0xff]
      %v1064 = vld [vmem:[#allocation2 + $0x30] sm:$0xff]
      %v1065 = vld [vmem:[#allocation2 + $0x38] sm:$0xff]
      %v1066 = vld [vmem:[#allocation2 + $0x40] sm:$0xff]
      %v1067 = vld [vmem:[#allocation2 + $0x48] sm:$0xff]
      %v1068 = vld [vmem:[#allocation2 + $0x50] sm:$0xff]
      %v1069 = vld [vmem:[#allocation2 + $0x58] sm:$0xff]
      %v1070 = vld [vmem:[#allocation2 + $0x60] sm:$0xff]
      %v1071 = vld [vmem:[#allocation2 + $0x68] sm:$0xff]
      %v1072 = vld [vmem:[#allocation2 + $0x70] sm:$0xff]
      %v1073 = vld [vmem:[#allocation2 + $0x78] sm:$0xff]
      %1074 = vmax.xlane.f32.xlu0 %v887
      %v1075 = vpop.xlane.xlu0 %1074
      %1076 = vmax.xlane.f32.xlu0 %v888
      %v1077 = vpop.xlane.xlu0 %1076
      %1078 = vmax.xlane.f32.xlu0 %v889
      %v1079 = vpop.xlane.xlu0 %1078
      %1080 = vmax.xlane.f32.xlu0 %v890
      %v1081 = vpop.xlane.xlu0 %1080
      %1082 = vmax.xlane.f32.xlu0 %v891
      %v1083 = vpop.xlane.xlu0 %1082
      %1084 = vmax.xlane.f32.xlu0 %v892
      %v1085 = vpop.xlane.xlu0 %1084
      %1086 = vmax.xlane.f32.xlu0 %v893
      %v1087 = vpop.xlane.xlu0 %1086
      %1088 = vmax.xlane.f32.xlu0 %v894
      %v1089 = vpop.xlane.xlu0 %1088
      %1090 = vmax.xlane.f32.xlu0 %v895
      %v1091 = vpop.xlane.xlu0 %1090
      %1092 = vmax.xlane.f32.xlu0 %v896
      %v1093 = vpop.xlane.xlu0 %1092
      %1094 = vmax.xlane.f32.xlu0 %v897
      %v1095 = vpop.xlane.xlu0 %1094
      %1096 = vmax.xlane.f32.xlu0 %v898
      %v1097 = vpop.xlane.xlu0 %1096
      %1098 = vmax.xlane.f32.xlu0 %v899
      %v1099 = vpop.xlane.xlu0 %1098
      %1100 = vmax.xlane.f32.xlu0 %v900
      %v1101 = vpop.xlane.xlu0 %1100
      %1102 = vmax.xlane.f32.xlu0 %v901
      %v1103 = vpop.xlane.xlu0 %1102
      %1104 = vmax.xlane.f32.xlu0 %v902
      %v1105 = vpop.xlane.xlu0 %1104
      %v1106 = vmax.f32 %v1058, %v1075
      %v1107 = vmax.f32 %v1059, %v1077
      %v1108 = vmax.f32 %v1060, %v1079
      %v1109 = vmax.f32 %v1061, %v1081
      %v1110 = vmax.f32 %v1062, %v1083
      %v1111 = vmax.f32 %v1063, %v1085
      %v1112 = vmax.f32 %v1064, %v1087
      %v1113 = vmax.f32 %v1065, %v1089
      %v1114 = vmax.f32 %v1066, %v1091
      %v1115 = vmax.f32 %v1067, %v1093
      %v1116 = vmax.f32 %v1068, %v1095
      %v1117 = vmax.f32 %v1069, %v1097
      %v1118 = vmax.f32 %v1070, %v1099
      %v1119 = vmax.f32 %v1071, %v1101
      %v1120 = vmax.f32 %v1072, %v1103
      %v1121 = vmax.f32 %v1073, %v1105
      %v1122 = vsub.f32 %v1058, %v1106
      %v1123 = vsub.f32 %v1059, %v1107
      %v1124 = vsub.f32 %v1060, %v1108
      %v1125 = vsub.f32 %v1061, %v1109
      %v1126 = vsub.f32 %v1062, %v1110
      %v1127 = vsub.f32 %v1063, %v1111
      %v1128 = vsub.f32 %v1064, %v1112
      %v1129 = vsub.f32 %v1065, %v1113
      %v1130 = vsub.f32 %v1066, %v1114
      %v1131 = vsub.f32 %v1067, %v1115
      %v1132 = vsub.f32 %v1068, %v1116
      %v1133 = vsub.f32 %v1069, %v1117
      %v1134 = vsub.f32 %v1070, %v1118
      %v1135 = vsub.f32 %v1071, %v1119
      %v1136 = vsub.f32 %v1072, %v1120
      %v1137 = vsub.f32 %v1073, %v1121
      %v1138 = vmul.f32 %v1122, 1.442695
      %v1139 = vpow.pop %v1138
      %v1140 = vmul.f32 %v1123, 1.442695
      %v1141 = vpow.pop %v1140
      %v1142 = vmul.f32 %v1124, 1.442695
      %v1143 = vpow.pop %v1142
      %v1144 = vmul.f32 %v1125, 1.442695
      %v1145 = vpow.pop %v1144
      %v1146 = vmul.f32 %v1126, 1.442695
      %v1147 = vpow.pop %v1146
      %v1148 = vmul.f32 %v1127, 1.442695
      %v1149 = vpow.pop %v1148
      %v1150 = vmul.f32 %v1128, 1.442695
      %v1151 = vpow.pop %v1150
      %v1152 = vmul.f32 %v1129, 1.442695
      %v1153 = vpow.pop %v1152
      %v1154 = vmul.f32 %v1130, 1.442695
      %v1155 = vpow.pop %v1154
      %v1156 = vmul.f32 %v1131, 1.442695
      %v1157 = vpow.pop %v1156
      %v1158 = vmul.f32 %v1132, 1.442695
      %v1159 = vpow.pop %v1158
      %v1160 = vmul.f32 %v1133, 1.442695
      %v1161 = vpow.pop %v1160
      %v1162 = vmul.f32 %v1134, 1.442695
      %v1163 = vpow.pop %v1162
      %v1164 = vmul.f32 %v1135, 1.442695
      %v1165 = vpow.pop %v1164
      %v1166 = vmul.f32 %v1136, 1.442695
      %v1167 = vpow.pop %v1166
      %v1168 = vmul.f32 %v1137, 1.442695
      %v1169 = vpow.pop %v1168
      %1171 = vset.pattern.permute.xlu0 0
      %1172 = vperm.xlu0 %1171, %v1106
      %v1173 = vpop.permute.xlu0 %1172
      %1176 = vset.pattern.permute.xlu0 0
      %1177 = vperm.xlu0 %1176, %v1107
      %v1178 = vpop.permute.xlu0 %1177
      %1181 = vset.pattern.permute.xlu0 0
      %1182 = vperm.xlu0 %1181, %v1108
      %v1183 = vpop.permute.xlu0 %1182
      %1186 = vset.pattern.permute.xlu0 0
      %1187 = vperm.xlu0 %1186, %v1109
      %v1188 = vpop.permute.xlu0 %1187
      %1191 = vset.pattern.permute.xlu0 0
      %1192 = vperm.xlu0 %1191, %v1110
      %v1193 = vpop.permute.xlu0 %1192
      %1196 = vset.pattern.permute.xlu0 0
      %1197 = vperm.xlu0 %1196, %v1111
      %v1198 = vpop.permute.xlu0 %1197
      %1201 = vset.pattern.permute.xlu0 0
      %1202 = vperm.xlu0 %1201, %v1112
      %v1203 = vpop.permute.xlu0 %1202
      %1206 = vset.pattern.permute.xlu0 0
      %1207 = vperm.xlu0 %1206, %v1113
      %v1208 = vpop.permute.xlu0 %1207
      %1211 = vset.pattern.permute.xlu0 0
      %1212 = vperm.xlu0 %1211, %v1114
      %v1213 = vpop.permute.xlu0 %1212
      %1216 = vset.pattern.permute.xlu0 0
      %1217 = vperm.xlu0 %1216, %v1115
      %v1218 = vpop.permute.xlu0 %1217
      %1221 = vset.pattern.permute.xlu0 0
      %1222 = vperm.xlu0 %1221, %v1116
      %v1223 = vpop.permute.xlu0 %1222
      %1226 = vset.pattern.permute.xlu0 0
      %1227 = vperm.xlu0 %1226, %v1117
      %v1228 = vpop.permute.xlu0 %1227
      %1231 = vset.pattern.permute.xlu0 0
      %1232 = vperm.xlu0 %1231, %v1118
      %v1233 = vpop.permute.xlu0 %1232
      %1236 = vset.pattern.permute.xlu0 0
      %1237 = vperm.xlu0 %1236, %v1119
      %v1238 = vpop.permute.xlu0 %1237
      %1241 = vset.pattern.permute.xlu0 0
      %1242 = vperm.xlu0 %1241, %v1120
      %v1243 = vpop.permute.xlu0 %1242
      %1246 = vset.pattern.permute.xlu0 0
      %1247 = vperm.xlu0 %1246, %v1121
      %v1248 = vpop.permute.xlu0 %1247
      %v1250 = vsub.f32 %v887, %v1173
      %v1251 = vsub.f32 %v888, %v1178
      %v1252 = vsub.f32 %v889, %v1183
      %v1253 = vsub.f32 %v890, %v1188
      %v1254 = vsub.f32 %v891, %v1193
      %v1255 = vsub.f32 %v892, %v1198
      %v1256 = vsub.f32 %v893, %v1203
      %v1257 = vsub.f32 %v894, %v1208
      %v1258 = vsub.f32 %v895, %v1213
      %v1259 = vsub.f32 %v896, %v1218
      %v1260 = vsub.f32 %v897, %v1223
      %v1261 = vsub.f32 %v898, %v1228
      %v1262 = vsub.f32 %v899, %v1233
      %v1263 = vsub.f32 %v900, %v1238
      %v1264 = vsub.f32 %v901, %v1243
      %v1265 = vsub.f32 %v902, %v1248
      %v1266 = vmul.f32 %v1250, 1.442695
      %v1267 = vpow.pop %v1266
      %v1268 = vmul.f32 %v1251, 1.442695
      %v1269 = vpow.pop %v1268
      %v1270 = vmul.f32 %v1252, 1.442695
      %v1271 = vpow.pop %v1270
      %v1272 = vmul.f32 %v1253, 1.442695
      %v1273 = vpow.pop %v1272
      %v1274 = vmul.f32 %v1254, 1.442695
      %v1275 = vpow.pop %v1274
      %v1276 = vmul.f32 %v1255, 1.442695
      %v1277 = vpow.pop %v1276
      %v1278 = vmul.f32 %v1256, 1.442695
      %v1279 = vpow.pop %v1278
      %v1280 = vmul.f32 %v1257, 1.442695
      %v1281 = vpow.pop %v1280
      %v1282 = vmul.f32 %v1258, 1.442695
      %v1283 = vpow.pop %v1282
      %v1284 = vmul.f32 %v1259, 1.442695
      %v1285 = vpow.pop %v1284
      %v1286 = vmul.f32 %v1260, 1.442695
      %v1287 = vpow.pop %v1286
      %v1288 = vmul.f32 %v1261, 1.442695
      %v1289 = vpow.pop %v1288
      %v1290 = vmul.f32 %v1262, 1.442695
      %v1291 = vpow.pop %v1290
      %v1292 = vmul.f32 %v1263, 1.442695
      %v1293 = vpow.pop %v1292
      %v1294 = vmul.f32 %v1264, 1.442695
      %v1295 = vpow.pop %v1294
      %v1296 = vmul.f32 %v1265, 1.442695
      %v1297 = vpow.pop %v1296
      %v1298 = vsel %vm1026, %v1267, 0.0
      %v1299 = vsel %vm1027, %v1269, 0.0
      %v1300 = vsel %vm1028, %v1271, 0.0
      %v1301 = vsel %vm1029, %v1273, 0.0
      %v1302 = vsel %vm1030, %v1275, 0.0
      %v1303 = vsel %vm1031, %v1277, 0.0
      %v1304 = vsel %vm1032, %v1279, 0.0
      %v1305 = vsel %vm1033, %v1281, 0.0
      %v1306 = vsel %vm1034, %v1283, 0.0
      %v1307 = vsel %vm1035, %v1285, 0.0
      %v1308 = vsel %vm1036, %v1287, 0.0
      %v1309 = vsel %vm1037, %v1289, 0.0
      %v1310 = vsel %vm1038, %v1291, 0.0
      %v1311 = vsel %vm1039, %v1293, 0.0
      %v1312 = vsel %vm1040, %v1295, 0.0
      %v1313 = vsel %vm1041, %v1297, 0.0
      %v1314 = vld [vmem:[#allocation3] sm:$0xff]
      %v1315 = vld [vmem:[#allocation3 + $0x8] sm:$0xff]
      %v1316 = vld [vmem:[#allocation3 + $0x10] sm:$0xff]
      %v1317 = vld [vmem:[#allocation3 + $0x18] sm:$0xff]
      %v1318 = vld [vmem:[#allocation3 + $0x20] sm:$0xff]
      %v1319 = vld [vmem:[#allocation3 + $0x28] sm:$0xff]
      %v1320 = vld [vmem:[#allocation3 + $0x30] sm:$0xff]
      %v1321 = vld [vmem:[#allocation3 + $0x38] sm:$0xff]
      %v1322 = vld [vmem:[#allocation3 + $0x40] sm:$0xff]
      %v1323 = vld [vmem:[#allocation3 + $0x48] sm:$0xff]
      %v1324 = vld [vmem:[#allocation3 + $0x50] sm:$0xff]
      %v1325 = vld [vmem:[#allocation3 + $0x58] sm:$0xff]
      %v1326 = vld [vmem:[#allocation3 + $0x60] sm:$0xff]
      %v1327 = vld [vmem:[#allocation3 + $0x68] sm:$0xff]
      %v1328 = vld [vmem:[#allocation3 + $0x70] sm:$0xff]
      %v1329 = vld [vmem:[#allocation3 + $0x78] sm:$0xff]
      %v1330 = vmul.f32 %v1314, %v1139
      %v1331 = vmul.f32 %v1315, %v1141
      %v1332 = vmul.f32 %v1316, %v1143
      %v1333 = vmul.f32 %v1317, %v1145
      %v1334 = vmul.f32 %v1318, %v1147
      %v1335 = vmul.f32 %v1319, %v1149
      %v1336 = vmul.f32 %v1320, %v1151
      %v1337 = vmul.f32 %v1321, %v1153
      %v1338 = vmul.f32 %v1322, %v1155
      %v1339 = vmul.f32 %v1323, %v1157
      %v1340 = vmul.f32 %v1324, %v1159
      %v1341 = vmul.f32 %v1325, %v1161
      %v1342 = vmul.f32 %v1326, %v1163
      %v1343 = vmul.f32 %v1327, %v1165
      %v1344 = vmul.f32 %v1328, %v1167
      %v1345 = vmul.f32 %v1329, %v1169
      %1346 = vadd.xlane.f32.xlu0 %v1298
      %v1347 = vpop.xlane.xlu0 %1346
      %1348 = vadd.xlane.f32.xlu0 %v1299
      %v1349 = vpop.xlane.xlu0 %1348
      %1350 = vadd.xlane.f32.xlu0 %v1300
      %v1351 = vpop.xlane.xlu0 %1350
      %1352 = vadd.xlane.f32.xlu0 %v1301
      %v1353 = vpop.xlane.xlu0 %1352
      %1354 = vadd.xlane.f32.xlu0 %v1302
      %v1355 = vpop.xlane.xlu0 %1354
      %1356 = vadd.xlane.f32.xlu0 %v1303
      %v1357 = vpop.xlane.xlu0 %1356
      %1358 = vadd.xlane.f32.xlu0 %v1304
      %v1359 = vpop.xlane.xlu0 %1358
      %1360 = vadd.xlane.f32.xlu0 %v1305
      %v1361 = vpop.xlane.xlu0 %1360
      %1362 = vadd.xlane.f32.xlu0 %v1306
      %v1363 = vpop.xlane.xlu0 %1362
      %1364 = vadd.xlane.f32.xlu0 %v1307
      %v1365 = vpop.xlane.xlu0 %1364
      %1366 = vadd.xlane.f32.xlu0 %v1308
      %v1367 = vpop.xlane.xlu0 %1366
      %1368 = vadd.xlane.f32.xlu0 %v1309
      %v1369 = vpop.xlane.xlu0 %1368
      %1370 = vadd.xlane.f32.xlu0 %v1310
      %v1371 = vpop.xlane.xlu0 %1370
      %1372 = vadd.xlane.f32.xlu0 %v1311
      %v1373 = vpop.xlane.xlu0 %1372
      %1374 = vadd.xlane.f32.xlu0 %v1312
      %v1375 = vpop.xlane.xlu0 %1374
      %1376 = vadd.xlane.f32.xlu0 %v1313
      %v1377 = vpop.xlane.xlu0 %1376
      %v1378 = vadd.f32 %v1330, %v1347
      %v1379 = vadd.f32 %v1331, %v1349
      %v1380 = vadd.f32 %v1332, %v1351
      %v1381 = vadd.f32 %v1333, %v1353
      %v1382 = vadd.f32 %v1334, %v1355
      %v1383 = vadd.f32 %v1335, %v1357
      %v1384 = vadd.f32 %v1336, %v1359
      %v1385 = vadd.f32 %v1337, %v1361
      %v1386 = vadd.f32 %v1338, %v1363
      %v1387 = vadd.f32 %v1339, %v1365
      %v1388 = vadd.f32 %v1340, %v1367
      %v1389 = vadd.f32 %v1341, %v1369
      %v1390 = vadd.f32 %v1342, %v1371
      %v1391 = vadd.f32 %v1343, %v1373
      %v1392 = vadd.f32 %v1344, %v1375
      %v1393 = vadd.f32 %v1345, %v1377
      %vm1394 = vcmask 7168
      %1395 = vst.msk [vmem:[#allocation3] sm:$0xff] %vm1394, %v1378
      %1396 = vst.msk [vmem:[#allocation3 + $0x8] sm:$0xff] %vm1394, %v1379
      %1397 = vst.msk [vmem:[#allocation3 + $0x10] sm:$0xff] %vm1394, %v1380
      %1398 = vst.msk [vmem:[#allocation3 + $0x18] sm:$0xff] %vm1394, %v1381
      %1399 = vst.msk [vmem:[#allocation3 + $0x20] sm:$0xff] %vm1394, %v1382
      %1400 = vst.msk [vmem:[#allocation3 + $0x28] sm:$0xff] %vm1394, %v1383
      %1401 = vst.msk [vmem:[#allocation3 + $0x30] sm:$0xff] %vm1394, %v1384
      %1402 = vst.msk [vmem:[#allocation3 + $0x38] sm:$0xff] %vm1394, %v1385
      %1403 = vst.msk [vmem:[#allocation3 + $0x40] sm:$0xff] %vm1394, %v1386
      %1404 = vst.msk [vmem:[#allocation3 + $0x48] sm:$0xff] %vm1394, %v1387
      %1405 = vst.msk [vmem:[#allocation3 + $0x50] sm:$0xff] %vm1394, %v1388
      %1406 = vst.msk [vmem:[#allocation3 + $0x58] sm:$0xff] %vm1394, %v1389
      %1407 = vst.msk [vmem:[#allocation3 + $0x60] sm:$0xff] %vm1394, %v1390
      %1408 = vst.msk [vmem:[#allocation3 + $0x68] sm:$0xff] %vm1394, %v1391
      %1409 = vst.msk [vmem:[#allocation3 + $0x70] sm:$0xff] %vm1394, %v1392
      %1410 = vst.msk [vmem:[#allocation3 + $0x78] sm:$0xff] %vm1394, %v1393
      %1411 = vst.msk [vmem:[#allocation2] sm:$0xff] %vm1394, %v1106
      %1412 = vst.msk [vmem:[#allocation2 + $0x8] sm:$0xff] %vm1394, %v1107
      %1413 = vst.msk [vmem:[#allocation2 + $0x10] sm:$0xff] %vm1394, %v1108
      %1414 = vst.msk [vmem:[#allocation2 + $0x18] sm:$0xff] %vm1394, %v1109
      %1415 = vst.msk [vmem:[#allocation2 + $0x20] sm:$0xff] %vm1394, %v1110
      %1416 = vst.msk [vmem:[#allocation2 + $0x28] sm:$0xff] %vm1394, %v1111
      %1417 = vst.msk [vmem:[#allocation2 + $0x30] sm:$0xff] %vm1394, %v1112
      %1418 = vst.msk [vmem:[#allocation2 + $0x38] sm:$0xff] %vm1394, %v1113
      %1419 = vst.msk [vmem:[#allocation2 + $0x40] sm:$0xff] %vm1394, %v1114
      %1420 = vst.msk [vmem:[#allocation2 + $0x48] sm:$0xff] %vm1394, %v1115
      %1421 = vst.msk [vmem:[#allocation2 + $0x50] sm:$0xff] %vm1394, %v1116
      %1422 = vst.msk [vmem:[#allocation2 + $0x58] sm:$0xff] %vm1394, %v1117
      %1423 = vst.msk [vmem:[#allocation2 + $0x60] sm:$0xff] %vm1394, %v1118
      %1424 = vst.msk [vmem:[#allocation2 + $0x68] sm:$0xff] %vm1394, %v1119
      %1425 = vst.msk [vmem:[#allocation2 + $0x70] sm:$0xff] %vm1394, %v1120
      %1426 = vst.msk [vmem:[#allocation2 + $0x78] sm:$0xff] %vm1394, %v1121
      %v1427 = vld [vmem:[#allocation4] sm:$0xff]
      %v1428 = vld [vmem:[#allocation4 + $0x8] sm:$0xff]
      %v1429 = vld [vmem:[#allocation4 + $0x10] sm:$0xff]
      %v1430 = vld [vmem:[#allocation4 + $0x18] sm:$0xff]
      %v1431 = vld [vmem:[#allocation4 + $0x20] sm:$0xff]
      %v1432 = vld [vmem:[#allocation4 + $0x28] sm:$0xff]
      %v1433 = vld [vmem:[#allocation4 + $0x30] sm:$0xff]
      %v1434 = vld [vmem:[#allocation4 + $0x38] sm:$0xff]
      %v1435 = vld [vmem:[#allocation4 + $0x40] sm:$0xff]
      %v1436 = vld [vmem:[#allocation4 + $0x48] sm:$0xff]
      %v1437 = vld [vmem:[#allocation4 + $0x50] sm:$0xff]
      %v1438 = vld [vmem:[#allocation4 + $0x58] sm:$0xff]
      %v1439 = vld [vmem:[#allocation4 + $0x60] sm:$0xff]
      %v1440 = vld [vmem:[#allocation4 + $0x68] sm:$0xff]
      %v1441 = vld [vmem:[#allocation4 + $0x70] sm:$0xff]
      %v1442 = vld [vmem:[#allocation4 + $0x78] sm:$0xff]
      %v1443 = vsel %vm1042, %v887, 0.0
      %v1444 = vsel %vm1043, %v888, 0.0
      %v1445 = vsel %vm1044, %v889, 0.0
      %v1446 = vsel %vm1045, %v890, 0.0
      %v1447 = vsel %vm1046, %v891, 0.0
      %v1448 = vsel %vm1047, %v892, 0.0
      %v1449 = vsel %vm1048, %v893, 0.0
      %v1450 = vsel %vm1049, %v894, 0.0
      %v1451 = vsel %vm1050, %v895, 0.0
      %v1452 = vsel %vm1051, %v896, 0.0
      %v1453 = vsel %vm1052, %v897, 0.0
      %v1454 = vsel %vm1053, %v898, 0.0
      %v1455 = vsel %vm1054, %v899, 0.0
      %v1456 = vsel %vm1055, %v900, 0.0
      %v1457 = vsel %vm1056, %v901, 0.0
      %v1458 = vsel %vm1057, %v902, 0.0
      %1459 = vadd.xlane.f32.xlu0 %v1443
      %v1460 = vpop.xlane.xlu0 %1459
      %1461 = vadd.xlane.f32.xlu0 %v1444
      %v1462 = vpop.xlane.xlu0 %1461
      %1463 = vadd.xlane.f32.xlu0 %v1445
      %v1464 = vpop.xlane.xlu0 %1463
      %1465 = vadd.xlane.f32.xlu0 %v1446
      %v1466 = vpop.xlane.xlu0 %1465
      %1467 = vadd.xlane.f32.xlu0 %v1447
      %v1468 = vpop.xlane.xlu0 %1467
      %1469 = vadd.xlane.f32.xlu0 %v1448
      %v1470 = vpop.xlane.xlu0 %1469
      %1471 = vadd.xlane.f32.xlu0 %v1449
      %v1472 = vpop.xlane.xlu0 %1471
      %1473 = vadd.xlane.f32.xlu0 %v1450
      %v1474 = vpop.xlane.xlu0 %1473
      %1475 = vadd.xlane.f32.xlu0 %v1451
      %v1476 = vpop.xlane.xlu0 %1475
      %1477 = vadd.xlane.f32.xlu0 %v1452
      %v1478 = vpop.xlane.xlu0 %1477
      %1479 = vadd.xlane.f32.xlu0 %v1453
      %v1480 = vpop.xlane.xlu0 %1479
      %1481 = vadd.xlane.f32.xlu0 %v1454
      %v1482 = vpop.xlane.xlu0 %1481
      %1483 = vadd.xlane.f32.xlu0 %v1455
      %v1484 = vpop.xlane.xlu0 %1483
      %1485 = vadd.xlane.f32.xlu0 %v1456
      %v1486 = vpop.xlane.xlu0 %1485
      %1487 = vadd.xlane.f32.xlu0 %v1457
      %v1488 = vpop.xlane.xlu0 %1487
      %1489 = vadd.xlane.f32.xlu0 %v1458
      %v1490 = vpop.xlane.xlu0 %1489
      %v1491 = vadd.f32 %v1427, %v1460
      %v1492 = vadd.f32 %v1428, %v1462
      %v1493 = vadd.f32 %v1429, %v1464
      %v1494 = vadd.f32 %v1430, %v1466
      %v1495 = vadd.f32 %v1431, %v1468
      %v1496 = vadd.f32 %v1432, %v1470
      %v1497 = vadd.f32 %v1433, %v1472
      %v1498 = vadd.f32 %v1434, %v1474
      %v1499 = vadd.f32 %v1435, %v1476
      %v1500 = vadd.f32 %v1436, %v1478
      %v1501 = vadd.f32 %v1437, %v1480
      %v1502 = vadd.f32 %v1438, %v1482
      %v1503 = vadd.f32 %v1439, %v1484
      %v1504 = vadd.f32 %v1440, %v1486
      %v1505 = vadd.f32 %v1441, %v1488
      %v1506 = vadd.f32 %v1442, %v1490
      %1507 = vst.msk [vmem:[#allocation4] sm:$0xff] %vm1394, %v1491
      %1508 = vst.msk [vmem:[#allocation4 + $0x8] sm:$0xff] %vm1394, %v1492
      %1509 = vst.msk [vmem:[#allocation4 + $0x10] sm:$0xff] %vm1394, %v1493
      %1510 = vst.msk [vmem:[#allocation4 + $0x18] sm:$0xff] %vm1394, %v1494
      %1511 = vst.msk [vmem:[#allocation4 + $0x20] sm:$0xff] %vm1394, %v1495
      %1512 = vst.msk [vmem:[#allocation4 + $0x28] sm:$0xff] %vm1394, %v1496
      %1513 = vst.msk [vmem:[#allocation4 + $0x30] sm:$0xff] %vm1394, %v1497
      %1514 = vst.msk [vmem:[#allocation4 + $0x38] sm:$0xff] %vm1394, %v1498
      %1515 = vst.msk [vmem:[#allocation4 + $0x40] sm:$0xff] %vm1394, %v1499
      %1516 = vst.msk [vmem:[#allocation4 + $0x48] sm:$0xff] %vm1394, %v1500
      %1517 = vst.msk [vmem:[#allocation4 + $0x50] sm:$0xff] %vm1394, %v1501
      %1518 = vst.msk [vmem:[#allocation4 + $0x58] sm:$0xff] %vm1394, %v1502
      %1519 = vst.msk [vmem:[#allocation4 + $0x60] sm:$0xff] %vm1394, %v1503
      %1520 = vst.msk [vmem:[#allocation4 + $0x68] sm:$0xff] %vm1394, %v1504
      %1521 = vst.msk [vmem:[#allocation4 + $0x70] sm:$0xff] %vm1394, %v1505
      %1522 = vst.msk [vmem:[#allocation4 + $0x78] sm:$0xff] %vm1394, %v1506
      %v1523 = vld [vmem:[#allocation5] sm:$0xff]
      %v1524 = vld [vmem:[#allocation5 + $0x8] sm:$0xff]
      %v1525 = vld [vmem:[#allocation5 + $0x10] sm:$0xff]
      %v1526 = vld [vmem:[#allocation5 + $0x18] sm:$0xff]
      %v1527 = vld [vmem:[#allocation5 + $0x20] sm:$0xff]
      %v1528 = vld [vmem:[#allocation5 + $0x28] sm:$0xff]
      %v1529 = vld [vmem:[#allocation5 + $0x30] sm:$0xff]
      %v1530 = vld [vmem:[#allocation5 + $0x38] sm:$0xff]
      %v1531 = vld [vmem:[#allocation5 + $0x40] sm:$0xff]
      %v1532 = vld [vmem:[#allocation5 + $0x48] sm:$0xff]
      %v1533 = vld [vmem:[#allocation5 + $0x50] sm:$0xff]
      %v1534 = vld [vmem:[#allocation5 + $0x58] sm:$0xff]
      %v1535 = vld [vmem:[#allocation5 + $0x60] sm:$0xff]
      %v1536 = vld [vmem:[#allocation5 + $0x68] sm:$0xff]
      %v1537 = vld [vmem:[#allocation5 + $0x70] sm:$0xff]
      %v1538 = vld [vmem:[#allocation5 + $0x78] sm:$0xff]
      %v1539 = vsel %vm1042, 1, 0
      %v1540 = vsel %vm1043, 1, 0
      %v1541 = vsel %vm1044, 1, 0
      %v1542 = vsel %vm1045, 1, 0
      %v1543 = vsel %vm1046, 1, 0
      %v1544 = vsel %vm1047, 1, 0
      %v1545 = vsel %vm1048, 1, 0
      %v1546 = vsel %vm1049, 1, 0
      %v1547 = vsel %vm1050, 1, 0
      %v1548 = vsel %vm1051, 1, 0
      %v1549 = vsel %vm1052, 1, 0
      %v1550 = vsel %vm1053, 1, 0
      %v1551 = vsel %vm1054, 1, 0
      %v1552 = vsel %vm1055, 1, 0
      %v1553 = vsel %vm1056, 1, 0
      %v1554 = vsel %vm1057, 1, 0
      %v1555 = vcvt.s32.f32 %v1539
      %v1556 = vcvt.s32.f32 %v1540
      %v1557 = vcvt.s32.f32 %v1541
      %v1558 = vcvt.s32.f32 %v1542
      %v1559 = vcvt.s32.f32 %v1543
      %v1560 = vcvt.s32.f32 %v1544
      %v1561 = vcvt.s32.f32 %v1545
      %v1562 = vcvt.s32.f32 %v1546
      %v1563 = vcvt.s32.f32 %v1547
      %v1564 = vcvt.s32.f32 %v1548
      %v1565 = vcvt.s32.f32 %v1549
      %v1566 = vcvt.s32.f32 %v1550
      %v1567 = vcvt.s32.f32 %v1551
      %v1568 = vcvt.s32.f32 %v1552
      %v1569 = vcvt.s32.f32 %v1553
      %v1570 = vcvt.s32.f32 %v1554
      %1571 = vadd.xlane.f32.xlu0 %v1555
      %v1572 = vpop.xlane.xlu0 %1571
      %1573 = vadd.xlane.f32.xlu0 %v1556
      %v1574 = vpop.xlane.xlu0 %1573
      %1575 = vadd.xlane.f32.xlu0 %v1557
      %v1576 = vpop.xlane.xlu0 %1575
      %1577 = vadd.xlane.f32.xlu0 %v1558
      %v1578 = vpop.xlane.xlu0 %1577
      %1579 = vadd.xlane.f32.xlu0 %v1559
      %v1580 = vpop.xlane.xlu0 %1579
      %1581 = vadd.xlane.f32.xlu0 %v1560
      %v1582 = vpop.xlane.xlu0 %1581
      %1583 = vadd.xlane.f32.xlu0 %v1561
      %v1584 = vpop.xlane.xlu0 %1583
      %1585 = vadd.xlane.f32.xlu0 %v1562
      %v1586 = vpop.xlane.xlu0 %1585
      %1587 = vadd.xlane.f32.xlu0 %v1563
      %v1588 = vpop.xlane.xlu0 %1587
      %1589 = vadd.xlane.f32.xlu0 %v1564
      %v1590 = vpop.xlane.xlu0 %1589
      %1591 = vadd.xlane.f32.xlu0 %v1565
      %v1592 = vpop.xlane.xlu0 %1591
      %1593 = vadd.xlane.f32.xlu0 %v1566
      %v1594 = vpop.xlane.xlu0 %1593
      %1595 = vadd.xlane.f32.xlu0 %v1567
      %v1596 = vpop.xlane.xlu0 %1595
      %1597 = vadd.xlane.f32.xlu0 %v1568
      %v1598 = vpop.xlane.xlu0 %1597
      %1599 = vadd.xlane.f32.xlu0 %v1569
      %v1600 = vpop.xlane.xlu0 %1599
      %1601 = vadd.xlane.f32.xlu0 %v1570
      %v1602 = vpop.xlane.xlu0 %1601
      %v1603 = vadd.f32 %v1523, %v1572
      %v1604 = vadd.f32 %v1524, %v1574
      %v1605 = vadd.f32 %v1525, %v1576
      %v1606 = vadd.f32 %v1526, %v1578
      %v1607 = vadd.f32 %v1527, %v1580
      %v1608 = vadd.f32 %v1528, %v1582
      %v1609 = vadd.f32 %v1529, %v1584
      %v1610 = vadd.f32 %v1530, %v1586
      %v1611 = vadd.f32 %v1531, %v1588
      %v1612 = vadd.f32 %v1532, %v1590
      %v1613 = vadd.f32 %v1533, %v1592
      %v1614 = vadd.f32 %v1534, %v1594
      %v1615 = vadd.f32 %v1535, %v1596
      %v1616 = vadd.f32 %v1536, %v1598
      %v1617 = vadd.f32 %v1537, %v1600
      %v1618 = vadd.f32 %v1538, %v1602
      %1619 = vst.msk [vmem:[#allocation5] sm:$0xff] %vm1394, %v1603
      %1620 = vst.msk [vmem:[#allocation5 + $0x8] sm:$0xff] %vm1394, %v1604
      %1621 = vst.msk [vmem:[#allocation5 + $0x10] sm:$0xff] %vm1394, %v1605
      %1622 = vst.msk [vmem:[#allocation5 + $0x18] sm:$0xff] %vm1394, %v1606
      %1623 = vst.msk [vmem:[#allocation5 + $0x20] sm:$0xff] %vm1394, %v1607
      %1624 = vst.msk [vmem:[#allocation5 + $0x28] sm:$0xff] %vm1394, %v1608
      %1625 = vst.msk [vmem:[#allocation5 + $0x30] sm:$0xff] %vm1394, %v1609
      %1626 = vst.msk [vmem:[#allocation5 + $0x38] sm:$0xff] %vm1394, %v1610
      %1627 = vst.msk [vmem:[#allocation5 + $0x40] sm:$0xff] %vm1394, %v1611
      %1628 = vst.msk [vmem:[#allocation5 + $0x48] sm:$0xff] %vm1394, %v1612
      %1629 = vst.msk [vmem:[#allocation5 + $0x50] sm:$0xff] %vm1394, %v1613
      %1630 = vst.msk [vmem:[#allocation5 + $0x58] sm:$0xff] %vm1394, %v1614
      %1631 = vst.msk [vmem:[#allocation5 + $0x60] sm:$0xff] %vm1394, %v1615
      %1632 = vst.msk [vmem:[#allocation5 + $0x68] sm:$0xff] %vm1394, %v1616
      %1633 = vst.msk [vmem:[#allocation5 + $0x70] sm:$0xff] %vm1394, %v1617
      %1634 = vst.msk [vmem:[#allocation5 + $0x78] sm:$0xff] %vm1394, %v1618
      %p1635 = scmp.eq.s32.totalorder %s21, 1
      // Predicated region
      $region45: #{tpu_custom_call.1} parent=39 // pred_check
        %p1636 = pneg %p1635
      $region46: #{tpu_custom_call.1} parent=39 // pred_check_branch
        %1638 = sbr.rel (%p1636) target = $region48
      $region47: #{tpu_custom_call.1} parent=39 // pred_region
        %v1639 = vld [vmem:[%s291] sm:$0xff]
        %v1640 = vld [vmem:[%s291 + $0x8] sm:$0xff]
        %v1641 = vld [vmem:[%s291 + $0x10] sm:$0xff]
        %v1642 = vld [vmem:[%s291 + $0x18] sm:$0xff]
        %v1643 = vld [vmem:[%s291 + $0x20] sm:$0xff]
        %v1644 = vld [vmem:[%s291 + $0x28] sm:$0xff]
        %v1645 = vld [vmem:[%s291 + $0x30] sm:$0xff]
        %v1646 = vld [vmem:[%s291 + $0x38] sm:$0xff]
        %v1647 = vld [vmem:[%s291 + $0x40] sm:$0xff]
        %v1648 = vld [vmem:[%s291 + $0x48] sm:$0xff]
        %v1649 = vld [vmem:[%s291 + $0x50] sm:$0xff]
        %v1650 = vld [vmem:[%s291 + $0x58] sm:$0xff]
        %v1651 = vld [vmem:[%s291 + $0x60] sm:$0xff]
        %v1652 = vld [vmem:[%s291 + $0x68] sm:$0xff]
        %v1653 = vld [vmem:[%s291 + $0x70] sm:$0xff]
        %v1654 = vld [vmem:[%s291 + $0x78] sm:$0xff]
        %vm1655 = vcmask 130048
        %v1656 = vsel %vm1655, %v1639, -inf
        %1657 = vmax.xlane.f32.xlu0 %v1656
        %v1658 = vpop.xlane.xlu0 %1657
        %v1659 = vsel %vm1655, %v1640, -inf
        %1660 = vmax.xlane.f32.xlu0 %v1659
        %v1661 = vpop.xlane.xlu0 %1660
        %v1662 = vsel %vm1655, %v1641, -inf
        %1663 = vmax.xlane.f32.xlu0 %v1662
        %v1664 = vpop.xlane.xlu0 %1663
        %v1665 = vsel %vm1655, %v1642, -inf
        %1666 = vmax.xlane.f32.xlu0 %v1665
        %v1667 = vpop.xlane.xlu0 %1666
        %v1668 = vsel %vm1655, %v1643, -inf
        %1669 = vmax.xlane.f32.xlu0 %v1668
        %v1670 = vpop.xlane.xlu0 %1669
        %v1671 = vsel %vm1655, %v1644, -inf
        %1672 = vmax.xlane.f32.xlu0 %v1671
        %v1673 = vpop.xlane.xlu0 %1672
        %v1674 = vsel %vm1655, %v1645, -inf
        %1675 = vmax.xlane.f32.xlu0 %v1674
        %v1676 = vpop.xlane.xlu0 %1675
        %v1677 = vsel %vm1655, %v1646, -inf
        %1678 = vmax.xlane.f32.xlu0 %v1677
        %v1679 = vpop.xlane.xlu0 %1678
        %v1680 = vsel %vm1655, %v1647, -inf
        %1681 = vmax.xlane.f32.xlu0 %v1680
        %v1682 = vpop.xlane.xlu0 %1681
        %v1683 = vsel %vm1655, %v1648, -inf
        %1684 = vmax.xlane.f32.xlu0 %v1683
        %v1685 = vpop.xlane.xlu0 %1684
        %v1686 = vsel %vm1655, %v1649, -inf
        %1687 = vmax.xlane.f32.xlu0 %v1686
        %v1688 = vpop.xlane.xlu0 %1687
        %v1689 = vsel %vm1655, %v1650, -inf
        %1690 = vmax.xlane.f32.xlu0 %v1689
        %v1691 = vpop.xlane.xlu0 %1690
        %v1692 = vsel %vm1655, %v1651, -inf
        %1693 = vmax.xlane.f32.xlu0 %v1692
        %v1694 = vpop.xlane.xlu0 %1693
        %v1695 = vsel %vm1655, %v1652, -inf
        %1696 = vmax.xlane.f32.xlu0 %v1695
        %v1697 = vpop.xlane.xlu0 %1696
        %v1698 = vsel %vm1655, %v1653, -inf
        %1699 = vmax.xlane.f32.xlu0 %v1698
        %v1700 = vpop.xlane.xlu0 %1699
        %v1701 = vsel %vm1655, %v1654, -inf
        %1702 = vmax.xlane.f32.xlu0 %v1701
        %v1703 = vpop.xlane.xlu0 %1702
        %v1704 = vsub.f32 %v1639, %v1658
        %v1705 = vsub.f32 %v1640, %v1661
        %v1706 = vsub.f32 %v1641, %v1664
        %v1707 = vsub.f32 %v1642, %v1667
        %v1708 = vsub.f32 %v1643, %v1670
        %v1709 = vsub.f32 %v1644, %v1673
        %v1710 = vsub.f32 %v1645, %v1676
        %v1711 = vsub.f32 %v1646, %v1679
        %v1712 = vsub.f32 %v1647, %v1682
        %v1713 = vsub.f32 %v1648, %v1685
        %v1714 = vsub.f32 %v1649, %v1688
        %v1715 = vsub.f32 %v1650, %v1691
        %v1716 = vsub.f32 %v1651, %v1694
        %v1717 = vsub.f32 %v1652, %v1697
        %v1718 = vsub.f32 %v1653, %v1700
        %v1719 = vsub.f32 %v1654, %v1703
        %v1720 = vmul.f32 %v1704, 1.442695
        %v1721 = vpow.pop %v1720
        %v1722 = vmul.f32 %v1705, 1.442695
        %v1723 = vpow.pop %v1722
        %v1724 = vmul.f32 %v1706, 1.442695
        %v1725 = vpow.pop %v1724
        %v1726 = vmul.f32 %v1707, 1.442695
        %v1727 = vpow.pop %v1726
        %v1728 = vmul.f32 %v1708, 1.442695
        %v1729 = vpow.pop %v1728
        %v1730 = vmul.f32 %v1709, 1.442695
        %v1731 = vpow.pop %v1730
        %v1732 = vmul.f32 %v1710, 1.442695
        %v1733 = vpow.pop %v1732
        %v1734 = vmul.f32 %v1711, 1.442695
        %v1735 = vpow.pop %v1734
        %v1736 = vmul.f32 %v1712, 1.442695
        %v1737 = vpow.pop %v1736
        %v1738 = vmul.f32 %v1713, 1.442695
        %v1739 = vpow.pop %v1738
        %v1740 = vmul.f32 %v1714, 1.442695
        %v1741 = vpow.pop %v1740
        %v1742 = vmul.f32 %v1715, 1.442695
        %v1743 = vpow.pop %v1742
        %v1744 = vmul.f32 %v1716, 1.442695
        %v1745 = vpow.pop %v1744
        %v1746 = vmul.f32 %v1717, 1.442695
        %v1747 = vpow.pop %v1746
        %v1748 = vmul.f32 %v1718, 1.442695
        %v1749 = vpow.pop %v1748
        %v1750 = vmul.f32 %v1719, 1.442695
        %v1751 = vpow.pop %v1750
        %v1752 = vsel %vm1655, %v1721, 0.0
        %1753 = vadd.xlane.f32.xlu0 %v1752
        %v1754 = vpop.xlane.xlu0 %1753
        %v1755 = vsel %vm1655, %v1723, 0.0
        %1756 = vadd.xlane.f32.xlu0 %v1755
        %v1757 = vpop.xlane.xlu0 %1756
        %v1758 = vsel %vm1655, %v1725, 0.0
        %1759 = vadd.xlane.f32.xlu0 %v1758
        %v1760 = vpop.xlane.xlu0 %1759
        %v1761 = vsel %vm1655, %v1727, 0.0
        %1762 = vadd.xlane.f32.xlu0 %v1761
        %v1763 = vpop.xlane.xlu0 %1762
        %v1764 = vsel %vm1655, %v1729, 0.0
        %1765 = vadd.xlane.f32.xlu0 %v1764
        %v1766 = vpop.xlane.xlu0 %1765
        %v1767 = vsel %vm1655, %v1731, 0.0
        %1768 = vadd.xlane.f32.xlu0 %v1767
        %v1769 = vpop.xlane.xlu0 %1768
        %v1770 = vsel %vm1655, %v1733, 0.0
        %1771 = vadd.xlane.f32.xlu0 %v1770
        %v1772 = vpop.xlane.xlu0 %1771
        %v1773 = vsel %vm1655, %v1735, 0.0
        %1774 = vadd.xlane.f32.xlu0 %v1773
        %v1775 = vpop.xlane.xlu0 %1774
        %v1776 = vsel %vm1655, %v1737, 0.0
        %1777 = vadd.xlane.f32.xlu0 %v1776
        %v1778 = vpop.xlane.xlu0 %1777
        %v1779 = vsel %vm1655, %v1739, 0.0
        %1780 = vadd.xlane.f32.xlu0 %v1779
        %v1781 = vpop.xlane.xlu0 %1780
        %v1782 = vsel %vm1655, %v1741, 0.0
        %1783 = vadd.xlane.f32.xlu0 %v1782
        %v1784 = vpop.xlane.xlu0 %1783
        %v1785 = vsel %vm1655, %v1743, 0.0
        %1786 = vadd.xlane.f32.xlu0 %v1785
        %v1787 = vpop.xlane.xlu0 %1786
        %v1788 = vsel %vm1655, %v1745, 0.0
        %1789 = vadd.xlane.f32.xlu0 %v1788
        %v1790 = vpop.xlane.xlu0 %1789
        %v1791 = vsel %vm1655, %v1747, 0.0
        %1792 = vadd.xlane.f32.xlu0 %v1791
        %v1793 = vpop.xlane.xlu0 %1792
        %v1794 = vsel %vm1655, %v1749, 0.0
        %1795 = vadd.xlane.f32.xlu0 %v1794
        %v1796 = vpop.xlane.xlu0 %1795
        %v1797 = vsel %vm1655, %v1751, 0.0
        %1798 = vadd.xlane.f32.xlu0 %v1797
        %v1799 = vpop.xlane.xlu0 %1798
        %v1800 = vlog2.pop %v1754
        %v1801 = vmul.f32 %v1800, 0.6931472
        %v1802 = vlog2.pop %v1757
        %v1803 = vmul.f32 %v1802, 0.6931472
        %v1804 = vlog2.pop %v1760
        %v1805 = vmul.f32 %v1804, 0.6931472
        %v1806 = vlog2.pop %v1763
        %v1807 = vmul.f32 %v1806, 0.6931472
        %v1808 = vlog2.pop %v1766
        %v1809 = vmul.f32 %v1808, 0.6931472
        %v1810 = vlog2.pop %v1769
        %v1811 = vmul.f32 %v1810, 0.6931472
        %v1812 = vlog2.pop %v1772
        %v1813 = vmul.f32 %v1812, 0.6931472
        %v1814 = vlog2.pop %v1775
        %v1815 = vmul.f32 %v1814, 0.6931472
        %v1816 = vlog2.pop %v1778
        %v1817 = vmul.f32 %v1816, 0.6931472
        %v1818 = vlog2.pop %v1781
        %v1819 = vmul.f32 %v1818, 0.6931472
        %v1820 = vlog2.pop %v1784
        %v1821 = vmul.f32 %v1820, 0.6931472
        %v1822 = vlog2.pop %v1787
        %v1823 = vmul.f32 %v1822, 0.6931472
        %v1824 = vlog2.pop %v1790
        %v1825 = vmul.f32 %v1824, 0.6931472
        %v1826 = vlog2.pop %v1793
        %v1827 = vmul.f32 %v1826, 0.6931472
        %v1828 = vlog2.pop %v1796
        %v1829 = vmul.f32 %v1828, 0.6931472
        %v1830 = vlog2.pop %v1799
        %v1831 = vmul.f32 %v1830, 0.6931472
        %v1832 = vadd.f32 %v1801, %v1658
        %v1833 = vadd.f32 %v1803, %v1661
        %v1834 = vadd.f32 %v1805, %v1664
        %v1835 = vadd.f32 %v1807, %v1667
        %v1836 = vadd.f32 %v1809, %v1670
        %v1837 = vadd.f32 %v1811, %v1673
        %v1838 = vadd.f32 %v1813, %v1676
        %v1839 = vadd.f32 %v1815, %v1679
        %v1840 = vadd.f32 %v1817, %v1682
        %v1841 = vadd.f32 %v1819, %v1685
        %v1842 = vadd.f32 %v1821, %v1688
        %v1843 = vadd.f32 %v1823, %v1691
        %v1844 = vadd.f32 %v1825, %v1694
        %v1845 = vadd.f32 %v1827, %v1697
        %v1846 = vadd.f32 %v1829, %v1700
        %v1847 = vadd.f32 %v1831, %v1703
        %v1848 = vld [vmem:[%s297] sm:$0xff]
        %v1849 = vld [vmem:[%s297 + $0x8] sm:$0xff]
        %v1850 = vld [vmem:[%s297 + $0x10] sm:$0xff]
        %v1851 = vld [vmem:[%s297 + $0x18] sm:$0xff]
        %v1852 = vld [vmem:[%s297 + $0x20] sm:$0xff]
        %v1853 = vld [vmem:[%s297 + $0x28] sm:$0xff]
        %v1854 = vld [vmem:[%s297 + $0x30] sm:$0xff]
        %v1855 = vld [vmem:[%s297 + $0x38] sm:$0xff]
        %v1856 = vld [vmem:[%s297 + $0x40] sm:$0xff]
        %v1857 = vld [vmem:[%s297 + $0x48] sm:$0xff]
        %v1858 = vld [vmem:[%s297 + $0x50] sm:$0xff]
        %v1859 = vld [vmem:[%s297 + $0x58] sm:$0xff]
        %v1860 = vld [vmem:[%s297 + $0x60] sm:$0xff]
        %v1861 = vld [vmem:[%s297 + $0x68] sm:$0xff]
        %v1862 = vld [vmem:[%s297 + $0x70] sm:$0xff]
        %v1863 = vld [vmem:[%s297 + $0x78] sm:$0xff]
        %1864 = vset.pattern.permute.xlu0 0
        %1865 = vperm.xlu0 %1864, %v1848
        %v1866 = vpop.permute.xlu0 %1865
        %1867 = vset.pattern.permute.xlu0 0
        %1868 = vperm.xlu0 %1867, %v1849
        %v1869 = vpop.permute.xlu0 %1868
        %1870 = vset.pattern.permute.xlu0 0
        %1871 = vperm.xlu0 %1870, %v1850
        %v1872 = vpop.permute.xlu0 %1871
        %1873 = vset.pattern.permute.xlu0 0
        %1874 = vperm.xlu0 %1873, %v1851
        %v1875 = vpop.permute.xlu0 %1874
        %1876 = vset.pattern.permute.xlu0 0
        %1877 = vperm.xlu0 %1876, %v1852
        %v1878 = vpop.permute.xlu0 %1877
        %1879 = vset.pattern.permute.xlu0 0
        %1880 = vperm.xlu0 %1879, %v1853
        %v1881 = vpop.permute.xlu0 %1880
        %1882 = vset.pattern.permute.xlu0 0
        %1883 = vperm.xlu0 %1882, %v1854
        %v1884 = vpop.permute.xlu0 %1883
        %1885 = vset.pattern.permute.xlu0 0
        %1886 = vperm.xlu0 %1885, %v1855
        %v1887 = vpop.permute.xlu0 %1886
        %1888 = vset.pattern.permute.xlu0 0
        %1889 = vperm.xlu0 %1888, %v1856
        %v1890 = vpop.permute.xlu0 %1889
        %1891 = vset.pattern.permute.xlu0 0
        %1892 = vperm.xlu0 %1891, %v1857
        %v1893 = vpop.permute.xlu0 %1892
        %1894 = vset.pattern.permute.xlu0 0
        %1895 = vperm.xlu0 %1894, %v1858
        %v1896 = vpop.permute.xlu0 %1895
        %1897 = vset.pattern.permute.xlu0 0
        %1898 = vperm.xlu0 %1897, %v1859
        %v1899 = vpop.permute.xlu0 %1898
        %1900 = vset.pattern.permute.xlu0 0
        %1901 = vperm.xlu0 %1900, %v1860
        %v1902 = vpop.permute.xlu0 %1901
        %1903 = vset.pattern.permute.xlu0 0
        %1904 = vperm.xlu0 %1903, %v1861
        %v1905 = vpop.permute.xlu0 %1904
        %1906 = vset.pattern.permute.xlu0 0
        %1907 = vperm.xlu0 %1906, %v1862
        %v1908 = vpop.permute.xlu0 %1907
        %1909 = vset.pattern.permute.xlu0 0
        %1910 = vperm.xlu0 %1909, %v1863
        %v1911 = vpop.permute.xlu0 %1910
        %vm1912 = vcmp.eq.s32.totalorder %v1006, %v1866
        %vm1913 = vcmp.eq.s32.totalorder %v1006, %v1869
        %vm1914 = vcmp.eq.s32.totalorder %v1006, %v1872
        %vm1915 = vcmp.eq.s32.totalorder %v1006, %v1875
        %vm1916 = vcmp.eq.s32.totalorder %v1006, %v1878
        %vm1917 = vcmp.eq.s32.totalorder %v1006, %v1881
        %vm1918 = vcmp.eq.s32.totalorder %v1006, %v1884
        %vm1919 = vcmp.eq.s32.totalorder %v1006, %v1887
        %vm1920 = vcmp.eq.s32.totalorder %v1006, %v1890
        %vm1921 = vcmp.eq.s32.totalorder %v1006, %v1893
        %vm1922 = vcmp.eq.s32.totalorder %v1006, %v1896
        %vm1923 = vcmp.eq.s32.totalorder %v1006, %v1899
        %vm1924 = vcmp.eq.s32.totalorder %v1006, %v1902
        %vm1925 = vcmp.eq.s32.totalorder %v1006, %v1905
        %vm1926 = vcmp.eq.s32.totalorder %v1006, %v1908
        %vm1927 = vcmp.eq.s32.totalorder %v1006, %v1911
        %v1928 = vsel %vm1912, %v1639, 0.0
        %v1929 = vsel %vm1913, %v1640, 0.0
        %v1930 = vsel %vm1914, %v1641, 0.0
        %v1931 = vsel %vm1915, %v1642, 0.0
        %v1932 = vsel %vm1916, %v1643, 0.0
        %v1933 = vsel %vm1917, %v1644, 0.0
        %v1934 = vsel %vm1918, %v1645, 0.0
        %v1935 = vsel %vm1919, %v1646, 0.0
        %v1936 = vsel %vm1920, %v1647, 0.0
        %v1937 = vsel %vm1921, %v1648, 0.0
        %v1938 = vsel %vm1922, %v1649, 0.0
        %v1939 = vsel %vm1923, %v1650, 0.0
        %v1940 = vsel %vm1924, %v1651, 0.0
        %v1941 = vsel %vm1925, %v1652, 0.0
        %v1942 = vsel %vm1926, %v1653, 0.0
        %v1943 = vsel %vm1927, %v1654, 0.0
        %v1944 = vsel %vm1655, %v1928, 0.0
        %1945 = vadd.xlane.f32.xlu0 %v1944
        %v1946 = vpop.xlane.xlu0 %1945
        %v1947 = vsel %vm1655, %v1929, 0.0
        %1948 = vadd.xlane.f32.xlu0 %v1947
        %v1949 = vpop.xlane.xlu0 %1948
        %v1950 = vsel %vm1655, %v1930, 0.0
        %1951 = vadd.xlane.f32.xlu0 %v1950
        %v1952 = vpop.xlane.xlu0 %1951
        %v1953 = vsel %vm1655, %v1931, 0.0
        %1954 = vadd.xlane.f32.xlu0 %v1953
        %v1955 = vpop.xlane.xlu0 %1954
        %v1956 = vsel %vm1655, %v1932, 0.0
        %1957 = vadd.xlane.f32.xlu0 %v1956
        %v1958 = vpop.xlane.xlu0 %1957
        %v1959 = vsel %vm1655, %v1933, 0.0
        %1960 = vadd.xlane.f32.xlu0 %v1959
        %v1961 = vpop.xlane.xlu0 %1960
        %v1962 = vsel %vm1655, %v1934, 0.0
        %1963 = vadd.xlane.f32.xlu0 %v1962
        %v1964 = vpop.xlane.xlu0 %1963
        %v1965 = vsel %vm1655, %v1935, 0.0
        %1966 = vadd.xlane.f32.xlu0 %v1965
        %v1967 = vpop.xlane.xlu0 %1966
        %v1968 = vsel %vm1655, %v1936, 0.0
        %1969 = vadd.xlane.f32.xlu0 %v1968
        %v1970 = vpop.xlane.xlu0 %1969
        %v1971 = vsel %vm1655, %v1937, 0.0
        %1972 = vadd.xlane.f32.xlu0 %v1971
        %v1973 = vpop.xlane.xlu0 %1972
        %v1974 = vsel %vm1655, %v1938, 0.0
        %1975 = vadd.xlane.f32.xlu0 %v1974
        %v1976 = vpop.xlane.xlu0 %1975
        %v1977 = vsel %vm1655, %v1939, 0.0
        %1978 = vadd.xlane.f32.xlu0 %v1977
        %v1979 = vpop.xlane.xlu0 %1978
        %v1980 = vsel %vm1655, %v1940, 0.0
        %1981 = vadd.xlane.f32.xlu0 %v1980
        %v1982 = vpop.xlane.xlu0 %1981
        %v1983 = vsel %vm1655, %v1941, 0.0
        %1984 = vadd.xlane.f32.xlu0 %v1983
        %v1985 = vpop.xlane.xlu0 %1984
        %v1986 = vsel %vm1655, %v1942, 0.0
        %1987 = vadd.xlane.f32.xlu0 %v1986
        %v1988 = vpop.xlane.xlu0 %1987
        %v1989 = vsel %vm1655, %v1943, 0.0
        %1990 = vadd.xlane.f32.xlu0 %v1989
        %v1991 = vpop.xlane.xlu0 %1990
        %v1992 = vsub.f32 %v1832, %v1946
        %v1993 = vsub.f32 %v1833, %v1949
        %v1994 = vsub.f32 %v1834, %v1952
        %v1995 = vsub.f32 %v1835, %v1955
        %v1996 = vsub.f32 %v1836, %v1958
        %v1997 = vsub.f32 %v1837, %v1961
        %v1998 = vsub.f32 %v1838, %v1964
        %v1999 = vsub.f32 %v1839, %v1967
        %v2000 = vsub.f32 %v1840, %v1970
        %v2001 = vsub.f32 %v1841, %v1973
        %v2002 = vsub.f32 %v1842, %v1976
        %v2003 = vsub.f32 %v1843, %v1979
        %v2004 = vsub.f32 %v1844, %v1982
        %v2005 = vsub.f32 %v1845, %v1985
        %v2006 = vsub.f32 %v1846, %v1988
        %v2007 = vsub.f32 %v1847, %v1991
        %v2008 = vld [vmem:[#allocation5] sm:$0xff]
        %v2009 = vld [vmem:[#allocation5 + $0x8] sm:$0xff]
        %v2010 = vld [vmem:[#allocation5 + $0x10] sm:$0xff]
        %v2011 = vld [vmem:[#allocation5 + $0x18] sm:$0xff]
        %v2012 = vld [vmem:[#allocation5 + $0x20] sm:$0xff]
        %v2013 = vld [vmem:[#allocation5 + $0x28] sm:$0xff]
        %v2014 = vld [vmem:[#allocation5 + $0x30] sm:$0xff]
        %v2015 = vld [vmem:[#allocation5 + $0x38] sm:$0xff]
        %v2016 = vld [vmem:[#allocation5 + $0x40] sm:$0xff]
        %v2017 = vld [vmem:[#allocation5 + $0x48] sm:$0xff]
        %v2018 = vld [vmem:[#allocation5 + $0x50] sm:$0xff]
        %v2019 = vld [vmem:[#allocation5 + $0x58] sm:$0xff]
        %v2020 = vld [vmem:[#allocation5 + $0x60] sm:$0xff]
        %v2021 = vld [vmem:[#allocation5 + $0x68] sm:$0xff]
        %v2022 = vld [vmem:[#allocation5 + $0x70] sm:$0xff]
        %v2023 = vld [vmem:[#allocation5 + $0x78] sm:$0xff]
        %v2024 = vld [vmem:[#allocation2] sm:$0xff]
        %v2025 = vld [vmem:[#allocation2 + $0x8] sm:$0xff]
        %v2026 = vld [vmem:[#allocation2 + $0x10] sm:$0xff]
        %v2027 = vld [vmem:[#allocation2 + $0x18] sm:$0xff]
        %v2028 = vld [vmem:[#allocation2 + $0x20] sm:$0xff]
        %v2029 = vld [vmem:[#allocation2 + $0x28] sm:$0xff]
        %v2030 = vld [vmem:[#allocation2 + $0x30] sm:$0xff]
        %v2031 = vld [vmem:[#allocation2 + $0x38] sm:$0xff]
        %v2032 = vld [vmem:[#allocation2 + $0x40] sm:$0xff]
        %v2033 = vld [vmem:[#allocation2 + $0x48] sm:$0xff]
        %v2034 = vld [vmem:[#allocation2 + $0x50] sm:$0xff]
        %v2035 = vld [vmem:[#allocation2 + $0x58] sm:$0xff]
        %v2036 = vld [vmem:[#allocation2 + $0x60] sm:$0xff]
        %v2037 = vld [vmem:[#allocation2 + $0x68] sm:$0xff]
        %v2038 = vld [vmem:[#allocation2 + $0x70] sm:$0xff]
        %v2039 = vld [vmem:[#allocation2 + $0x78] sm:$0xff]
        %v2040 = vld [vmem:[#allocation3] sm:$0xff]
        %v2041 = vld [vmem:[#allocation3 + $0x8] sm:$0xff]
        %v2042 = vld [vmem:[#allocation3 + $0x10] sm:$0xff]
        %v2043 = vld [vmem:[#allocation3 + $0x18] sm:$0xff]
        %v2044 = vld [vmem:[#allocation3 + $0x20] sm:$0xff]
        %v2045 = vld [vmem:[#allocation3 + $0x28] sm:$0xff]
        %v2046 = vld [vmem:[#allocation3 + $0x30] sm:$0xff]
        %v2047 = vld [vmem:[#allocation3 + $0x38] sm:$0xff]
        %v2048 = vld [vmem:[#allocation3 + $0x40] sm:$0xff]
        %v2049 = vld [vmem:[#allocation3 + $0x48] sm:$0xff]
        %v2050 = vld [vmem:[#allocation3 + $0x50] sm:$0xff]
        %v2051 = vld [vmem:[#allocation3 + $0x58] sm:$0xff]
        %v2052 = vld [vmem:[#allocation3 + $0x60] sm:$0xff]
        %v2053 = vld [vmem:[#allocation3 + $0x68] sm:$0xff]
        %v2054 = vld [vmem:[#allocation3 + $0x70] sm:$0xff]
        %v2055 = vld [vmem:[#allocation3 + $0x78] sm:$0xff]
        %v2056 = vadd.f32 %v2040, 1e-12
        %v2057 = vadd.f32 %v2041, 1e-12
        %v2058 = vadd.f32 %v2042, 1e-12
        %v2059 = vadd.f32 %v2043, 1e-12
        %v2060 = vadd.f32 %v2044, 1e-12
        %v2061 = vadd.f32 %v2045, 1e-12
        %v2062 = vadd.f32 %v2046, 1e-12
        %v2063 = vadd.f32 %v2047, 1e-12
        %v2064 = vadd.f32 %v2048, 1e-12
        %v2065 = vadd.f32 %v2049, 1e-12
        %v2066 = vadd.f32 %v2050, 1e-12
        %v2067 = vadd.f32 %v2051, 1e-12
        %v2068 = vadd.f32 %v2052, 1e-12
        %v2069 = vadd.f32 %v2053, 1e-12
        %v2070 = vadd.f32 %v2054, 1e-12
        %v2071 = vadd.f32 %v2055, 1e-12
        %v2072 = vlog2.pop %v2056
        %v2073 = vmul.f32 %v2072, 0.6931472
        %v2074 = vlog2.pop %v2057
        %v2075 = vmul.f32 %v2074, 0.6931472
        %v2076 = vlog2.pop %v2058
        %v2077 = vmul.f32 %v2076, 0.6931472
        %v2078 = vlog2.pop %v2059
        %v2079 = vmul.f32 %v2078, 0.6931472
        %v2080 = vlog2.pop %v2060
        %v2081 = vmul.f32 %v2080, 0.6931472
        %v2082 = vlog2.pop %v2061
        %v2083 = vmul.f32 %v2082, 0.6931472
        %v2084 = vlog2.pop %v2062
        %v2085 = vmul.f32 %v2084, 0.6931472
        %v2086 = vlog2.pop %v2063
        %v2087 = vmul.f32 %v2086, 0.6931472
        %v2088 = vlog2.pop %v2064
        %v2089 = vmul.f32 %v2088, 0.6931472
        %v2090 = vlog2.pop %v2065
        %v2091 = vmul.f32 %v2090, 0.6931472
        %v2092 = vlog2.pop %v2066
        %v2093 = vmul.f32 %v2092, 0.6931472
        %v2094 = vlog2.pop %v2067
        %v2095 = vmul.f32 %v2094, 0.6931472
        %v2096 = vlog2.pop %v2068
        %v2097 = vmul.f32 %v2096, 0.6931472
        %v2098 = vlog2.pop %v2069
        %v2099 = vmul.f32 %v2098, 0.6931472
        %v2100 = vlog2.pop %v2070
        %v2101 = vmul.f32 %v2100, 0.6931472
        %v2102 = vlog2.pop %v2071
        %v2103 = vmul.f32 %v2102, 0.6931472
        %v2104 = vadd.f32 %v2024, %v2073
        %v2105 = vadd.f32 %v2025, %v2075
        %v2106 = vadd.f32 %v2026, %v2077
        %v2107 = vadd.f32 %v2027, %v2079
        %v2108 = vadd.f32 %v2028, %v2081
        %v2109 = vadd.f32 %v2029, %v2083
        %v2110 = vadd.f32 %v2030, %v2085
        %v2111 = vadd.f32 %v2031, %v2087
        %v2112 = vadd.f32 %v2032, %v2089
        %v2113 = vadd.f32 %v2033, %v2091
        %v2114 = vadd.f32 %v2034, %v2093
        %v2115 = vadd.f32 %v2035, %v2095
        %v2116 = vadd.f32 %v2036, %v2097
        %v2117 = vadd.f32 %v2037, %v2099
        %v2118 = vadd.f32 %v2038, %v2101
        %v2119 = vadd.f32 %v2039, %v2103
        %v2120 = vmax.f32 %v2008, 1.0
        %v2121 = vmax.f32 %v2009, 1.0
        %v2122 = vmax.f32 %v2010, 1.0
        %v2123 = vmax.f32 %v2011, 1.0
        %v2124 = vmax.f32 %v2012, 1.0
        %v2125 = vmax.f32 %v2013, 1.0
        %v2126 = vmax.f32 %v2014, 1.0
        %v2127 = vmax.f32 %v2015, 1.0
        %v2128 = vmax.f32 %v2016, 1.0
        %v2129 = vmax.f32 %v2017, 1.0
        %v2130 = vmax.f32 %v2018, 1.0
        %v2131 = vmax.f32 %v2019, 1.0
        %v2132 = vmax.f32 %v2020, 1.0
        %v2133 = vmax.f32 %v2021, 1.0
        %v2134 = vmax.f32 %v2022, 1.0
        %v2135 = vmax.f32 %v2023, 1.0
        %v2136 = vrcp.pop %v2120
        %v2137 = vrcp.pop %v2121
        %v2138 = vrcp.pop %v2122
        %v2139 = vrcp.pop %v2123
        %v2140 = vrcp.pop %v2124
        %v2141 = vrcp.pop %v2125
        %v2142 = vrcp.pop %v2126
        %v2143 = vrcp.pop %v2127
        %v2144 = vrcp.pop %v2128
        %v2145 = vrcp.pop %v2129
        %v2146 = vrcp.pop %v2130
        %v2147 = vrcp.pop %v2131
        %v2148 = vrcp.pop %v2132
        %v2149 = vrcp.pop %v2133
        %v2150 = vrcp.pop %v2134
        %v2151 = vrcp.pop %v2135
        %v2152 = vld [vmem:[#allocation4] sm:$0xff]
        %v2153 = vld [vmem:[#allocation4 + $0x8] sm:$0xff]
        %v2154 = vld [vmem:[#allocation4 + $0x10] sm:$0xff]
        %v2155 = vld [vmem:[#allocation4 + $0x18] sm:$0xff]
        %v2156 = vld [vmem:[#allocation4 + $0x20] sm:$0xff]
        %v2157 = vld [vmem:[#allocation4 + $0x28] sm:$0xff]
        %v2158 = vld [vmem:[#allocation4 + $0x30] sm:$0xff]
        %v2159 = vld [vmem:[#allocation4 + $0x38] sm:$0xff]
        %v2160 = vld [vmem:[#allocation4 + $0x40] sm:$0xff]
        %v2161 = vld [vmem:[#allocation4 + $0x48] sm:$0xff]
        %v2162 = vld [vmem:[#allocation4 + $0x50] sm:$0xff]
        %v2163 = vld [vmem:[#allocation4 + $0x58] sm:$0xff]
        %v2164 = vld [vmem:[#allocation4 + $0x60] sm:$0xff]
        %v2165 = vld [vmem:[#allocation4 + $0x68] sm:$0xff]
        %v2166 = vld [vmem:[#allocation4 + $0x70] sm:$0xff]
        %v2167 = vld [vmem:[#allocation4 + $0x78] sm:$0xff]
        %v2168 = vmul.f32 %v2008, %v2104
        %v2169 = vmul.f32 %v2009, %v2105
        %v2170 = vmul.f32 %v2010, %v2106
        %v2171 = vmul.f32 %v2011, %v2107
        %v2172 = vmul.f32 %v2012, %v2108
        %v2173 = vmul.f32 %v2013, %v2109
        %v2174 = vmul.f32 %v2014, %v2110
        %v2175 = vmul.f32 %v2015, %v2111
        %v2176 = vmul.f32 %v2016, %v2112
        %v2177 = vmul.f32 %v2017, %v2113
        %v2178 = vmul.f32 %v2018, %v2114
        %v2179 = vmul.f32 %v2019, %v2115
        %v2180 = vmul.f32 %v2020, %v2116
        %v2181 = vmul.f32 %v2021, %v2117
        %v2182 = vmul.f32 %v2022, %v2118
        %v2183 = vmul.f32 %v2023, %v2119
        %v2184 = vsub.f32 %v2152, %v2168
        %v2185 = vsub.f32 %v2153, %v2169
        %v2186 = vsub.f32 %v2154, %v2170
        %v2187 = vsub.f32 %v2155, %v2171
        %v2188 = vsub.f32 %v2156, %v2172
        %v2189 = vsub.f32 %v2157, %v2173
        %v2190 = vsub.f32 %v2158, %v2174
        %v2191 = vsub.f32 %v2159, %v2175
        %v2192 = vsub.f32 %v2160, %v2176
        %v2193 = vsub.f32 %v2161, %v2177
        %v2194 = vsub.f32 %v2162, %v2178
        %v2195 = vsub.f32 %v2163, %v2179
        %v2196 = vsub.f32 %v2164, %v2180
        %v2197 = vsub.f32 %v2165, %v2181
        %v2198 = vsub.f32 %v2166, %v2182
        %v2199 = vsub.f32 %v2167, %v2183
        %v2200 = vsub.f32 0.0, %v2184
        %v2201 = vsub.f32 0.0, %v2185
        %v2202 = vsub.f32 0.0, %v2186
        %v2203 = vsub.f32 0.0, %v2187
        %v2204 = vsub.f32 0.0, %v2188
        %v2205 = vsub.f32 0.0, %v2189
        %v2206 = vsub.f32 0.0, %v2190
        %v2207 = vsub.f32 0.0, %v2191
        %v2208 = vsub.f32 0.0, %v2192
        %v2209 = vsub.f32 0.0, %v2193
        %v2210 = vsub.f32 0.0, %v2194
        %v2211 = vsub.f32 0.0, %v2195
        %v2212 = vsub.f32 0.0, %v2196
        %v2213 = vsub.f32 0.0, %v2197
        %v2214 = vsub.f32 0.0, %v2198
        %v2215 = vsub.f32 0.0, %v2199
        %v2216 = vmul.f32 %v2200, %v2136
        %v2217 = vmul.f32 %v2201, %v2137
        %v2218 = vmul.f32 %v2202, %v2138
        %v2219 = vmul.f32 %v2203, %v2139
        %v2220 = vmul.f32 %v2204, %v2140
        %v2221 = vmul.f32 %v2205, %v2141
        %v2222 = vmul.f32 %v2206, %v2142
        %v2223 = vmul.f32 %v2207, %v2143
        %v2224 = vmul.f32 %v2208, %v2144
        %v2225 = vmul.f32 %v2209, %v2145
        %v2226 = vmul.f32 %v2210, %v2146
        %v2227 = vmul.f32 %v2211, %v2147
        %v2228 = vmul.f32 %v2212, %v2148
        %v2229 = vmul.f32 %v2213, %v2149
        %v2230 = vmul.f32 %v2214, %v2150
        %v2231 = vmul.f32 %v2215, %v2151
        %v2232 = vmul.f32 %v1992, 0.5
        %v2233 = vmul.f32 %v1993, 0.5
        %v2234 = vmul.f32 %v1994, 0.5
        %v2235 = vmul.f32 %v1995, 0.5
        %v2236 = vmul.f32 %v1996, 0.5
        %v2237 = vmul.f32 %v1997, 0.5
        %v2238 = vmul.f32 %v1998, 0.5
        %v2239 = vmul.f32 %v1999, 0.5
        %v2240 = vmul.f32 %v2000, 0.5
        %v2241 = vmul.f32 %v2001, 0.5
        %v2242 = vmul.f32 %v2002, 0.5
        %v2243 = vmul.f32 %v2003, 0.5
        %v2244 = vmul.f32 %v2004, 0.5
        %v2245 = vmul.f32 %v2005, 0.5
        %v2246 = vmul.f32 %v2006, 0.5
        %v2247 = vmul.f32 %v2007, 0.5
        %v2248 = vmul.f32 %v2216, 0.5
        %v2249 = vmul.f32 %v2217, 0.5
        %v2250 = vmul.f32 %v2218, 0.5
        %v2251 = vmul.f32 %v2219, 0.5
        %v2252 = vmul.f32 %v2220, 0.5
        %v2253 = vmul.f32 %v2221, 0.5
        %v2254 = vmul.f32 %v2222, 0.5
        %v2255 = vmul.f32 %v2223, 0.5
        %v2256 = vmul.f32 %v2224, 0.5
        %v2257 = vmul.f32 %v2225, 0.5
        %v2258 = vmul.f32 %v2226, 0.5
        %v2259 = vmul.f32 %v2227, 0.5
        %v2260 = vmul.f32 %v2228, 0.5
        %v2261 = vmul.f32 %v2229, 0.5
        %v2262 = vmul.f32 %v2230, 0.5
        %v2263 = vmul.f32 %v2231, 0.5
        %v2264 = vadd.f32 %v2232, %v2248
        %v2265 = vadd.f32 %v2233, %v2249
        %v2266 = vadd.f32 %v2234, %v2250
        %v2267 = vadd.f32 %v2235, %v2251
        %v2268 = vadd.f32 %v2236, %v2252
        %v2269 = vadd.f32 %v2237, %v2253
        %v2270 = vadd.f32 %v2238, %v2254
        %v2271 = vadd.f32 %v2239, %v2255
        %v2272 = vadd.f32 %v2240, %v2256
        %v2273 = vadd.f32 %v2241, %v2257
        %v2274 = vadd.f32 %v2242, %v2258
        %v2275 = vadd.f32 %v2243, %v2259
        %v2276 = vadd.f32 %v2244, %v2260
        %v2277 = vadd.f32 %v2245, %v2261
        %v2278 = vadd.f32 %v2246, %v2262
        %v2279 = vadd.f32 %v2247, %v2263
        %2280 = vst.msk [vmem:[%s318] sm:$0xff] %vm1394, %v2264
        %2281 = vst.msk [vmem:[%s318 + $0x8] sm:$0xff] %vm1394, %v2265
        %2282 = vst.msk [vmem:[%s318 + $0x10] sm:$0xff] %vm1394, %v2266
        %2283 = vst.msk [vmem:[%s318 + $0x18] sm:$0xff] %vm1394, %v2267
        %2284 = vst.msk [vmem:[%s318 + $0x20] sm:$0xff] %vm1394, %v2268
        %2285 = vst.msk [vmem:[%s318 + $0x28] sm:$0xff] %vm1394, %v2269
        %2286 = vst.msk [vmem:[%s318 + $0x30] sm:$0xff] %vm1394, %v2270
        %2287 = vst.msk [vmem:[%s318 + $0x38] sm:$0xff] %vm1394, %v2271
        %2288 = vst.msk [vmem:[%s318 + $0x40] sm:$0xff] %vm1394, %v2272
        %2289 = vst.msk [vmem:[%s318 + $0x48] sm:$0xff] %vm1394, %v2273
        %2290 = vst.msk [vmem:[%s318 + $0x50] sm:$0xff] %vm1394, %v2274
        %2291 = vst.msk [vmem:[%s318 + $0x58] sm:$0xff] %vm1394, %v2275
        %2292 = vst.msk [vmem:[%s318 + $0x60] sm:$0xff] %vm1394, %v2276
        %2293 = vst.msk [vmem:[%s318 + $0x68] sm:$0xff] %vm1394, %v2277
        %2294 = vst.msk [vmem:[%s318 + $0x70] sm:$0xff] %vm1394, %v2278
        %2295 = vst.msk [vmem:[%s318 + $0x78] sm:$0xff] %vm1394, %v2279
      $region48: #{tpu_custom_call.1} parent=39 // pred_fallthru
        _
      %s2296 = smul.u32 16, %s20
      %p2297 = scmp.lt.s32.totalorder %s2296, 31
      %s2298 = scalar_select %p2297, %s2296, 31
      %s2299 = smul.addr %s2298, 8
      %s2300 = scalar_lea.vmem %s5, %s2299
      // Predicated region
      $region49: #{tpu_custom_call.1} parent=39 // pred_check
        %p2301 = pneg %p176
      $region50: #{tpu_custom_call.1} parent=39 // pred_check_branch
        %2303 = sbr.rel (%p2301) target = $region52
      $region51: #{tpu_custom_call.1} parent=39 // pred_region
        %s2304 = smul.u32 16, %s20
      $region52: #{tpu_custom_call.1} parent=39 // pred_fallthru
        _
    $region40: #{tpu_custom_call.1} parent=5 // pred_fallthru
      _
    %p2305 = scmp.le.s32.totalorder 2, %s11
    // Predicated region
    $region53: #{tpu_custom_call.1} parent=5 // pred_check
      %p2306 = pneg %p2305
    $region54: #{tpu_custom_call.1} parent=5 // pred_check_branch
      %2308 = sbr.rel (%p2306) target = $region56
    $region55: #{tpu_custom_call.1} parent=5 // pred_region
      %s2309 = ssub.s32 %s11, 2
      // Predicated region
      $region57: #{tpu_custom_call.1} parent=55 // pred_check
        %p2310 = pneg %p182
      $region58: #{tpu_custom_call.1} parent=55 // pred_check_branch
        %2312 = sbr.rel (%p2310) target = $region60
      $region59: #{tpu_custom_call.1} parent=55 // pred_region
        %s2313 = smul.u32 16, %s22
        %p2314 = scmp.lt.s32.totalorder %s2313, 31
        %s2315 = scalar_select %p2314, %s2313, 31
        %s2316 = smul.addr %s2315, 8
        %s2317 = scalar_lea.vmem %s5, %s2316
      $region60: #{tpu_custom_call.1} parent=55 // pred_fallthru
        _
    $region56: #{tpu_custom_call.1} parent=5 // pred_fallthru
      _
  $region6: #{tpu_custom_call.1} parent=0 // loop_footer
    %s15 = sadd.s32 1, %s11
  $region7: #{tpu_custom_call.1} parent=0 // loop_footer_branch
    %10 = sbr.rel target = $region3
  $region8: #{tpu_custom_call.1} parent=0 // loop_exit
    _

</llo_original>
